<compile_context>
chip_gen: v5e
topology: v5e:2x2
jax: 0.10.0
libtpu: 0.0.40
codegen_flags: <defaults>
</compile_context>

<pallas_src>
import jax
import jax.numpy as jnp
from jax.experimental import pallas as pl
from jax.experimental.pallas import tpu as pltpu


def downsample_conv2d_kernel(x_ref, w_ref, b_ref, o_ref, pad_ref, acc_ref):
    # x_ref  : (Bt, Hp, 2, Wp, 2*Cin)   NHWC with the 2x2 window split out
    # w_ref  : (9, Cin, Cout)           HWIO weights, tap-major
    # b_ref  : (1, Cout)
    # o_ref  : (Bt*Hp*Wp, Cout)         lane-dense output slab
    # pad_ref: (Bt, Hp+2, Wp+2, Cin)    zero-padded pooled plane (VMEM scratch)
    # acc_ref: (Bt*Hp*Wp, Cout) f32     matmul accumulator (VMEM scratch)
    Bt, Hp, _, Wp, C2 = x_ref.shape
    Cin = C2 // 2
    dt = pad_ref.dtype
    M = Bt * Hp * Wp

    # --- 2x2 average pool: f32 adds, one cast on the store (helps bf16/v5e) ---
    xv = x_ref[...]                                           # (Bt, Hp, 2, Wp, 2*Cin)
    rows = xv[:, :, 0].astype(jnp.float32) + xv[:, :, 1].astype(jnp.float32)
    pooled = (rows[..., :Cin] + rows[..., Cin:]) * 0.25       # (Bt, Hp, Wp, Cin) f32

    # --- zero pad by 1: border-only stores, interior written once ------------
    zrow = jnp.zeros((Bt, 1, Wp + 2, Cin), dt)
    zcol = jnp.zeros((Bt, Hp, 1, Cin), dt)
    pad_ref[:, 0:1, :, :] = zrow
    pad_ref[:, Hp + 1:Hp + 2, :, :] = zrow
    pad_ref[:, 1:Hp + 1, 0:1, :] = zcol
    pad_ref[:, 1:Hp + 1, Wp + 1:Wp + 2, :] = zcol
    pad_ref[:, 1:Hp + 1, 1:Wp + 1, :] = pooled.astype(dt)

    # --- 3x3 conv: 9 accumulated MXU matmuls into a 2-D f32 accumulator ------
    for t in range(9):
        kh, kw = t // 3, t % 3
        win = pad_ref[:, kh:kh + Hp, kw:kw + Wp, :]           # (Bt, Hp, Wp, Cin)
        part = jnp.dot(win.reshape(M, Cin), w_ref[t],
                       preferred_element_type=jnp.float32)    # (M, Cout) f32
        if t == 0:
            acc_ref[...] = part
        else:
            acc_ref[...] += part

    o_ref[...] = (acc_ref[...] + b_ref[...].astype(jnp.float32)).astype(o_ref.dtype)


def _pick_batch_tile(N, Hp, Wp, target=512):
    """Largest-enough divisor of N so M = Bt*Hp*Wp feeds the MXU well while the
    output block's sublane count stays a multiple of 8 (BlockSpec constraint)."""
    pix = Hp * Wp
    cands = [bt for bt in range(1, N + 1)
             if N % bt == 0 and (bt == N or (bt * pix) % 8 == 0)]
    for bt in cands:
        if bt * pix >= target:
            return bt
    return cands[-1]


def downsample_conv2d(x_nchw, weight, bias):
    """x_nchw: (N, Cin, H, W); weight (HWIO): (3, 3, Cin, Cout); bias: (Cout,)."""
    N, Cin, H, W = x_nchw.shape
    assert weight.shape[:3] == (3, 3, Cin), weight.shape
    Cout = weight.shape[-1]
    assert H % 2 == 0 and W % 2 == 0, "SpaceToDepth(2) requires even H and W"
    Hp, Wp = H // 2, W // 2

    # Single NCHW->NHWC transpose, then a contiguous (free) reshape exposing the
    # 2x2 pooling window as (row-in-pair, w-in-pair*Cin) axes.
    x = jnp.transpose(x_nchw, (0, 2, 3, 1)).reshape(N, Hp, 2, Wp, 2 * Cin)

    # HWIO -> (9, Cin, Cout), tap index t = kh*3 + kw (matches the kernel loop).
    # NOTE: weights must be HWIO; an OIHW (PyTorch) tensor must be permuted
    # first or the K axis silently permutes.
    w3 = weight.reshape(9, Cin, Cout).astype(x.dtype)
    b2 = bias.reshape(1, Cout)

    Bt = _pick_batch_tile(N, Hp, Wp)
    M = Bt * Hp * Wp
    grid = (N // Bt,)

    # Explicit VMEM budget (double-buffered blocks + scratch), with headroom.
    isz = x.dtype.itemsize
    est = (2 * Bt * Hp * 2 * Wp * 2 * Cin * isz      # input block
           + 2 * 9 * Cin * Cout * isz                # weights
           + 2 * Cout * isz                          # bias
           + 2 * M * Cout * isz                      # output block
           + Bt * (Hp + 2) * (Wp + 2) * Cin * isz    # padded plane scratch
           + M * Cout * 4)                           # f32 accumulator scratch
    vmem_limit = int(min(64 * 1024 * 1024, max(32 * 1024 * 1024, 2 * est)))

    out2d = pl.pallas_call(
        downsample_conv2d_kernel,
        out_shape=jax.ShapeDtypeStruct((N * Hp * Wp, Cout), x.dtype),
        grid=grid,
        in_specs=[
            pl.BlockSpec((Bt, Hp, 2, Wp, 2 * Cin), lambda n: (n, 0, 0, 0, 0)),
            pl.BlockSpec((9, Cin, Cout), lambda n: (0, 0, 0)),   # fetched once
            pl.BlockSpec((1, Cout), lambda n: (0, 0)),
        ],
        out_specs=pl.BlockSpec((M, Cout), lambda n: (n, 0)),
        scratch_shapes=[
            pltpu.VMEM((Bt, Hp + 2, Wp + 2, Cin), x.dtype),      # padded plane
            pltpu.VMEM((M, Cout), jnp.float32),                  # f32 accumulator
        ],
        compiler_params=pltpu.CompilerParams(
            dimension_semantics=("parallel",),
            vmem_limit_bytes=vmem_limit),
    )(x, w3, b2)

    out = out2d.reshape(N, Hp, Wp, Cout)
    return jnp.transpose(out, (0, 3, 1, 2))                      # NHWC -> NCHW


def reference(x_nchw, weight, bias):
    """Pure-JAX reference: 2x2 avg-pool then 3x3 conv (pad 1)."""
    N, Cin, H, W = x_nchw.shape
    pooled = x_nchw.reshape(N, Cin, H // 2, 2, W // 2, 2).mean(axis=(3, 5))
    out = jax.lax.conv_general_dilated(
        jnp.transpose(pooled, (0, 2, 3, 1)), weight,
        window_strides=(1, 1), padding=((1, 1), (1, 1)),
        dimension_numbers=("NHWC", "HWIO", "NHWC"))
    out = out + bias[None, None, None, :]
    return jnp.transpose(out, (0, 3, 1, 2))


if __name__ == "__main__":
    key = jax.random.PRNGKey(0)
    k1, k2, k3 = jax.random.split(key, 3)

    N, Cin, H, W = 2, 4, 16, 16
    Cout = 8

    x = jax.random.normal(k1, (N, Cin, H, W), jnp.float32)

    # Deterministic init mimicking PyTorch Conv2d defaults:
    # U(-1/sqrt(fan_in), 1/sqrt(fan_in)) with fan_in = Cin*3*3.
    bound = 1.0 / (Cin * 3 * 3) ** 0.5
    weight = jax.random.uniform(k2, (3, 3, Cin, Cout), jnp.float32, -bound, bound)
    bias = jax.random.uniform(k3, (Cout,), jnp.float32, -bound, bound)

    out = jax.block_until_ready(downsample_conv2d(x, weight, bias))
    ref = reference(x, weight, bias)

    assert out.shape == (N, Cout, H // 2, W // 2), out.shape
    max_err = float(jnp.max(jnp.abs(out - ref)))
    assert jnp.allclose(out, ref, atol=1e-4, rtol=1e-4), max_err
    print("KERNEL_OK")
</pallas_src>

<mosaic_0001>
module attributes {stable_mosaic.version = 11 : i64} {
  func.func @downsample_conv2d_kernel(%arg0: i32, %arg1: memref<2x8x2x8x8xf32, #tpu.memory_space<vmem>>, %arg2: memref<9x4x8xf32, #tpu.memory_space<vmem>>, %arg3: memref<1x8xf32, #tpu.memory_space<vmem>>, %arg4: memref<128x8xf32, #tpu.memory_space<vmem>>, %arg5: memref<2x10x10x4xf32, #tpu.memory_space<vmem>>, %arg6: memref<128x8xf32, #tpu.memory_space<vmem>>) attributes {dimension_semantics = [#tpu.dimension_semantics<parallel>], iteration_bounds = array<i64: 1>, scalar_prefetch = 0 : i64, scratch_operands = 2 : i64, tpu.core_type = #tpu.core_type<tc>, window_params = [{transform_indices = @transform_0, window_bounds = array<i64: 2, 8, 2, 8, 8>}, {pipeline_mode = #tpu.pipeline_mode<synchronous>, transform_indices = @transform_1, window_bounds = array<i64: 9, 4, 8>}, {pipeline_mode = #tpu.pipeline_mode<synchronous>, transform_indices = @transform_2, window_bounds = array<i64: 1, 8>}, {transform_indices = @transform_3, window_bounds = array<i64: 128, 8>}]} {
    %c0 = arith.constant 0 : index
    %c0_0 = arith.constant 0 : index
    %c0_1 = arith.constant 0 : index
    %c0_2 = arith.constant 0 : index
    %c0_3 = arith.constant 0 : index
    %0 = vector.load %arg1[%c0, %c0_0, %c0_1, %c0_2, %c0_3] : memref<2x8x2x8x8xf32, #tpu.memory_space<vmem>>, vector<2x8x2x8x8xf32>
    %1 = vector.extract_strided_slice %0 {offsets = [0, 0, 0, 0, 0], sizes = [2, 8, 1, 8, 8], strides = [1, 1, 1, 1, 1]} : vector<2x8x2x8x8xf32> to vector<2x8x1x8x8xf32>
    %2 = vector.shape_cast %1 : vector<2x8x1x8x8xf32> to vector<2x8x8x8xf32>
    %3 = vector.extract_strided_slice %0 {offsets = [0, 0, 1, 0, 0], sizes = [2, 8, 1, 8, 8], strides = [1, 1, 1, 1, 1]} : vector<2x8x2x8x8xf32> to vector<2x8x1x8x8xf32>
    %4 = vector.shape_cast %3 : vector<2x8x1x8x8xf32> to vector<2x8x8x8xf32>
    %5 = arith.addf %2, %4 : vector<2x8x8x8xf32>
    %6 = vector.extract_strided_slice %5 {offsets = [0, 0, 0, 0], sizes = [2, 8, 8, 4], strides = [1, 1, 1, 1]} : vector<2x8x8x8xf32> to vector<2x8x8x4xf32>
    %7 = vector.extract_strided_slice %5 {offsets = [0, 0, 0, 4], sizes = [2, 8, 8, 4], strides = [1, 1, 1, 1]} : vector<2x8x8x8xf32> to vector<2x8x8x4xf32>
    %8 = arith.addf %6, %7 : vector<2x8x8x4xf32>
    %cst = arith.constant 2.500000e-01 : f32
    %9 = vector.broadcast %cst : f32 to vector<2x8x8x4xf32>
    %10 = arith.mulf %8, %9 : vector<2x8x8x4xf32>
    %cst_4 = arith.constant 0.000000e+00 : f32
    %11 = vector.broadcast %cst_4 : f32 to vector<2x1x10x4xf32>
    %cst_5 = arith.constant 0.000000e+00 : f32
    %12 = vector.broadcast %cst_5 : f32 to vector<2x8x1x4xf32>
    %c0_6 = arith.constant 0 : index
    %c0_7 = arith.constant 0 : index
    %c0_8 = arith.constant 0 : index
    %c0_9 = arith.constant 0 : index
    %13 = vector.load %arg5[%c0_6, %c0_7, %c0_8, %c0_9] : memref<2x10x10x4xf32, #tpu.memory_space<vmem>>, vector<2x1x10x4xf32>
    tpu.vector_store %arg5[%c0_6, %c0_7, %c0_8, %c0_9], %11 {strides = array<i32>} : memref<2x10x10x4xf32, #tpu.memory_space<vmem>>, vector<2x1x10x4xf32>,
    %c0_10 = arith.constant 0 : index
    %c9 = arith.constant 9 : index
    %c0_11 = arith.constant 0 : index
    %c0_12 = arith.constant 0 : index
    %14 = vector.load %arg5[%c0_10, %c9, %c0_11, %c0_12] : memref<2x10x10x4xf32, #tpu.memory_space<vmem>>, vector<2x1x10x4xf32>
    tpu.vector_store %arg5[%c0_10, %c9, %c0_11, %c0_12], %11 {strides = array<i32>} : memref<2x10x10x4xf32, #tpu.memory_space<vmem>>, vector<2x1x10x4xf32>,
    %c0_13 = arith.constant 0 : index
    %c1 = arith.constant 1 : index
    %c0_14 = arith.constant 0 : index
    %c0_15 = arith.constant 0 : index
    %15 = vector.load %arg5[%c0_13, %c1, %c0_14, %c0_15] : memref<2x10x10x4xf32, #tpu.memory_space<vmem>>, vector<2x8x1x4xf32>
    tpu.vector_store %arg5[%c0_13, %c1, %c0_14, %c0_15], %12 {strides = array<i32>} : memref<2x10x10x4xf32, #tpu.memory_space<vmem>>, vector<2x8x1x4xf32>,
    %c0_16 = arith.constant 0 : index
    %c1_17 = arith.constant 1 : index
    %c9_18 = arith.constant 9 : index
    %c0_19 = arith.constant 0 : index
    %16 = vector.load %arg5[%c0_16, %c1_17, %c9_18, %c0_19] : memref<2x10x10x4xf32, #tpu.memory_space<vmem>>, vector<2x8x1x4xf32>
    tpu.vector_store %arg5[%c0_16, %c1_17, %c9_18, %c0_19], %12 {strides = array<i32>} : memref<2x10x10x4xf32, #tpu.memory_space<vmem>>, vector<2x8x1x4xf32>,
    %c0_20 = arith.constant 0 : index
    %c1_21 = arith.constant 1 : index
    %c1_22 = arith.constant 1 : index
    %c0_23 = arith.constant 0 : index
    %17 = vector.load %arg5[%c0_20, %c1_21, %c1_22, %c0_23] : memref<2x10x10x4xf32, #tpu.memory_space<vmem>>, vector<2x8x8x4xf32>
    tpu.vector_store %arg5[%c0_20, %c1_21, %c1_22, %c0_23], %10 {strides = array<i32>} : memref<2x10x10x4xf32, #tpu.memory_space<vmem>>, vector<2x8x8x4xf32>,
    %c0_24 = arith.constant 0 : index
    %c0_25 = arith.constant 0 : index
    %c0_26 = arith.constant 0 : index
    %c0_27 = arith.constant 0 : index
    %18 = vector.load %arg5[%c0_24, %c0_25, %c0_26, %c0_27] : memref<2x10x10x4xf32, #tpu.memory_space<vmem>>, vector<2x8x8x4xf32>
    %19 = vector.shape_cast %18 : vector<2x8x8x4xf32> to vector<128x4xf32>
    %c0_28 = arith.constant 0 : index
    %c0_29 = arith.constant 0 : index
    %c0_30 = arith.constant 0 : index
    %20 = vector.load %arg2[%c0_28, %c0_29, %c0_30] : memref<9x4x8xf32, #tpu.memory_space<vmem>>, vector<1x4x8xf32>
    %21 = vector.shape_cast %20 : vector<1x4x8xf32> to vector<4x8xf32>
    %cst_31 = arith.constant dense<0.000000e+00> : vector<128x8xf32>
    %22 = tpu.matmul %19, %21, %cst_31 {dimension_numbers = #tpu.dot_dimension_numbers<[1], [0], [0], [1], [0, 0, 1, 1], [], []>} : vector<128x4xf32>, vector<4x8xf32>, vector<128x8xf32> -> vector<128x8xf32>
    %c0_32 = arith.constant 0 : index
    %c0_33 = arith.constant 0 : index
    %23 = vector.load %arg6[%c0_32, %c0_33] : memref<128x8xf32, #tpu.memory_space<vmem>>, vector<128x8xf32>
    tpu.vector_store %arg6[%c0_32, %c0_33], %22 {strides = array<i32>} : memref<128x8xf32, #tpu.memory_space<vmem>>, vector<128x8xf32>,
    %c0_34 = arith.constant 0 : index
    %c0_35 = arith.constant 0 : index
    %c1_36 = arith.constant 1 : index
    %c0_37 = arith.constant 0 : index
    %24 = vector.load %arg5[%c0_34, %c0_35, %c1_36, %c0_37] : memref<2x10x10x4xf32, #tpu.memory_space<vmem>>, vector<2x8x8x4xf32>
    %25 = vector.shape_cast %24 : vector<2x8x8x4xf32> to vector<128x4xf32>
    %c1_38 = arith.constant 1 : index
    %c0_39 = arith.constant 0 : index
    %c0_40 = arith.constant 0 : index
    %26 = vector.load %arg2[%c1_38, %c0_39, %c0_40] : memref<9x4x8xf32, #tpu.memory_space<vmem>>, vector<1x4x8xf32>
    %27 = vector.shape_cast %26 : vector<1x4x8xf32> to vector<4x8xf32>
    %cst_41 = arith.constant dense<0.000000e+00> : vector<128x8xf32>
    %28 = tpu.matmul %25, %27, %cst_41 {dimension_numbers = #tpu.dot_dimension_numbers<[1], [0], [0], [1], [0, 0, 1, 1], [], []>} : vector<128x4xf32>, vector<4x8xf32>, vector<128x8xf32> -> vector<128x8xf32>
    %c0_42 = arith.constant 0 : index
    %c0_43 = arith.constant 0 : index
    %29 = vector.load %arg6[%c0_42, %c0_43] : memref<128x8xf32, #tpu.memory_space<vmem>>, vector<128x8xf32>
    %30 = arith.addf %29, %28 : vector<128x8xf32>
    %c0_44 = arith.constant 0 : index
    %c0_45 = arith.constant 0 : index
    %31 = vector.load %arg6[%c0_44, %c0_45] : memref<128x8xf32, #tpu.memory_space<vmem>>, vector<128x8xf32>
    tpu.vector_store %arg6[%c0_44, %c0_45], %30 {strides = array<i32>} : memref<128x8xf32, #tpu.memory_space<vmem>>, vector<128x8xf32>,
    %c0_46 = arith.constant 0 : index
    %c0_47 = arith.constant 0 : index
    %c2 = arith.constant 2 : index
    %c0_48 = arith.constant 0 : index
    %32 = vector.load %arg5[%c0_46, %c0_47, %c2, %c0_48] : memref<2x10x10x4xf32, #tpu.memory_space<vmem>>, vector<2x8x8x4xf32>
    %33 = vector.shape_cast %32 : vector<2x8x8x4xf32> to vector<128x4xf32>
    %c2_49 = arith.constant 2 : index
    %c0_50 = arith.constant 0 : index
    %c0_51 = arith.constant 0 : index
    %34 = vector.load %arg2[%c2_49, %c0_50, %c0_51] : memref<9x4x8xf32, #tpu.memory_space<vmem>>, vector<1x4x8xf32>
    %35 = vector.shape_cast %34 : vector<1x4x8xf32> to vector<4x8xf32>
    %cst_52 = arith.constant dense<0.000000e+00> : vector<128x8xf32>
    %36 = tpu.matmul %33, %35, %cst_52 {dimension_numbers = #tpu.dot_dimension_numbers<[1], [0], [0], [1], [0, 0, 1, 1], [], []>} : vector<128x4xf32>, vector<4x8xf32>, vector<128x8xf32> -> vector<128x8xf32>
    %c0_53 = arith.constant 0 : index
    %c0_54 = arith.constant 0 : index
    %37 = vector.load %arg6[%c0_53, %c0_54] : memref<128x8xf32, #tpu.memory_space<vmem>>, vector<128x8xf32>
    %38 = arith.addf %37, %36 : vector<128x8xf32>
    %c0_55 = arith.constant 0 : index
    %c0_56 = arith.constant 0 : index
    %39 = vector.load %arg6[%c0_55, %c0_56] : memref<128x8xf32, #tpu.memory_space<vmem>>, vector<128x8xf32>
    tpu.vector_store %arg6[%c0_55, %c0_56], %38 {strides = array<i32>} : memref<128x8xf32, #tpu.memory_space<vmem>>, vector<128x8xf32>,
    %c0_57 = arith.constant 0 : index
    %c1_58 = arith.constant 1 : index
    %c0_59 = arith.constant 0 : index
    %c0_60 = arith.constant 0 : index
    %40 = vector.load %arg5[%c0_57, %c1_58, %c0_59, %c0_60] : memref<2x10x10x4xf32, #tpu.memory_space<vmem>>, vector<2x8x8x4xf32>
    %41 = vector.shape_cast %40 : vector<2x8x8x4xf32> to vector<128x4xf32>
    %c3 = arith.constant 3 : index
    %c0_61 = arith.constant 0 : index
    %c0_62 = arith.constant 0 : index
    %42 = vector.load %arg2[%c3, %c0_61, %c0_62] : memref<9x4x8xf32, #tpu.memory_space<vmem>>, vector<1x4x8xf32>
    %43 = vector.shape_cast %42 : vector<1x4x8xf32> to vector<4x8xf32>
    %cst_63 = arith.constant dense<0.000000e+00> : vector<128x8xf32>
    %44 = tpu.matmul %41, %43, %cst_63 {dimension_numbers = #tpu.dot_dimension_numbers<[1], [0], [0], [1], [0, 0, 1, 1], [], []>} : vector<128x4xf32>, vector<4x8xf32>, vector<128x8xf32> -> vector<128x8xf32>
    %c0_64 = arith.constant 0 : index
    %c0_65 = arith.constant 0 : index
    %45 = vector.load %arg6[%c0_64, %c0_65] : memref<128x8xf32, #tpu.memory_space<vmem>>, vector<128x8xf32>
    %46 = arith.addf %45, %44 : vector<128x8xf32>
    %c0_66 = arith.constant 0 : index
    %c0_67 = arith.constant 0 : index
    %47 = vector.load %arg6[%c0_66, %c0_67] : memref<128x8xf32, #tpu.memory_space<vmem>>, vector<128x8xf32>
    tpu.vector_store %arg6[%c0_66, %c0_67], %46 {strides = array<i32>} : memref<128x8xf32, #tpu.memory_space<vmem>>, vector<128x8xf32>,
    %c0_68 = arith.constant 0 : index
    %c1_69 = arith.constant 1 : index
    %c1_70 = arith.constant 1 : index
    %c0_71 = arith.constant 0 : index
    %48 = vector.load %arg5[%c0_68, %c1_69, %c1_70, %c0_71] : memref<2x10x10x4xf32, #tpu.memory_space<vmem>>, vector<2x8x8x4xf32>
    %49 = vector.shape_cast %48 : vector<2x8x8x4xf32> to vector<128x4xf32>
    %c4 = arith.constant 4 : index
    %c0_72 = arith.constant 0 : index
    %c0_73 = arith.constant 0 : index
    %50 = vector.load %arg2[%c4, %c0_72, %c0_73] : memref<9x4x8xf32, #tpu.memory_space<vmem>>, vector<1x4x8xf32>
    %51 = vector.shape_cast %50 : vector<1x4x8xf32> to vector<4x8xf32>
    %cst_74 = arith.constant dense<0.000000e+00> : vector<128x8xf32>
    %52 = tpu.matmul %49, %51, %cst_74 {dimension_numbers = #tpu.dot_dimension_numbers<[1], [0], [0], [1], [0, 0, 1, 1], [], []>} : vector<128x4xf32>, vector<4x8xf32>, vector<128x8xf32> -> vector<128x8xf32>
    %c0_75 = arith.constant 0 : index
    %c0_76 = arith.constant 0 : index
    %53 = vector.load %arg6[%c0_75, %c0_76] : memref<128x8xf32, #tpu.memory_space<vmem>>, vector<128x8xf32>
    %54 = arith.addf %53, %52 : vector<128x8xf32>
    %c0_77 = arith.constant 0 : index
    %c0_78 = arith.constant 0 : index
    %55 = vector.load %arg6[%c0_77, %c0_78] : memref<128x8xf32, #tpu.memory_space<vmem>>, vector<128x8xf32>
    tpu.vector_store %arg6[%c0_77, %c0_78], %54 {strides = array<i32>} : memref<128x8xf32, #tpu.memory_space<vmem>>, vector<128x8xf32>,
    %c0_79 = arith.constant 0 : index
    %c1_80 = arith.constant 1 : index
    %c2_81 = arith.constant 2 : index
    %c0_82 = arith.constant 0 : index
    %56 = vector.load %arg5[%c0_79, %c1_80, %c2_81, %c0_82] : memref<2x10x10x4xf32, #tpu.memory_space<vmem>>, vector<2x8x8x4xf32>
    %57 = vector.shape_cast %56 : vector<2x8x8x4xf32> to vector<128x4xf32>
    %c5 = arith.constant 5 : index
    %c0_83 = arith.constant 0 : index
    %c0_84 = arith.constant 0 : index
    %58 = vector.load %arg2[%c5, %c0_83, %c0_84] : memref<9x4x8xf32, #tpu.memory_space<vmem>>, vector<1x4x8xf32>
    %59 = vector.shape_cast %58 : vector<1x4x8xf32> to vector<4x8xf32>
    %cst_85 = arith.constant dense<0.000000e+00> : vector<128x8xf32>
    %60 = tpu.matmul %57, %59, %cst_85 {dimension_numbers = #tpu.dot_dimension_numbers<[1], [0], [0], [1], [0, 0, 1, 1], [], []>} : vector<128x4xf32>, vector<4x8xf32>, vector<128x8xf32> -> vector<128x8xf32>
    %c0_86 = arith.constant 0 : index
    %c0_87 = arith.constant 0 : index
    %61 = vector.load %arg6[%c0_86, %c0_87] : memref<128x8xf32, #tpu.memory_space<vmem>>, vector<128x8xf32>
    %62 = arith.addf %61, %60 : vector<128x8xf32>
    %c0_88 = arith.constant 0 : index
    %c0_89 = arith.constant 0 : index
    %63 = vector.load %arg6[%c0_88, %c0_89] : memref<128x8xf32, #tpu.memory_space<vmem>>, vector<128x8xf32>
    tpu.vector_store %arg6[%c0_88, %c0_89], %62 {strides = array<i32>} : memref<128x8xf32, #tpu.memory_space<vmem>>, vector<128x8xf32>,
    %c0_90 = arith.constant 0 : index
    %c2_91 = arith.constant 2 : index
    %c0_92 = arith.constant 0 : index
    %c0_93 = arith.constant 0 : index
    %64 = vector.load %arg5[%c0_90, %c2_91, %c0_92, %c0_93] : memref<2x10x10x4xf32, #tpu.memory_space<vmem>>, vector<2x8x8x4xf32>
    %65 = vector.shape_cast %64 : vector<2x8x8x4xf32> to vector<128x4xf32>
    %c6 = arith.constant 6 : index
    %c0_94 = arith.constant 0 : index
    %c0_95 = arith.constant 0 : index
    %66 = vector.load %arg2[%c6, %c0_94, %c0_95] : memref<9x4x8xf32, #tpu.memory_space<vmem>>, vector<1x4x8xf32>
    %67 = vector.shape_cast %66 : vector<1x4x8xf32> to vector<4x8xf32>
    %cst_96 = arith.constant dense<0.000000e+00> : vector<128x8xf32>
    %68 = tpu.matmul %65, %67, %cst_96 {dimension_numbers = #tpu.dot_dimension_numbers<[1], [0], [0], [1], [0, 0, 1, 1], [], []>} : vector<128x4xf32>, vector<4x8xf32>, vector<128x8xf32> -> vector<128x8xf32>
    %c0_97 = arith.constant 0 : index
    %c0_98 = arith.constant 0 : index
    %69 = vector.load %arg6[%c0_97, %c0_98] : memref<128x8xf32, #tpu.memory_space<vmem>>, vector<128x8xf32>
    %70 = arith.addf %69, %68 : vector<128x8xf32>
    %c0_99 = arith.constant 0 : index
    %c0_100 = arith.constant 0 : index
    %71 = vector.load %arg6[%c0_99, %c0_100] : memref<128x8xf32, #tpu.memory_space<vmem>>, vector<128x8xf32>
    tpu.vector_store %arg6[%c0_99, %c0_100], %70 {strides = array<i32>} : memref<128x8xf32, #tpu.memory_space<vmem>>, vector<128x8xf32>,
    %c0_101 = arith.constant 0 : index
    %c2_102 = arith.constant 2 : index
    %c1_103 = arith.constant 1 : index
    %c0_104 = arith.constant 0 : index
    %72 = vector.load %arg5[%c0_101, %c2_102, %c1_103, %c0_104] : memref<2x10x10x4xf32, #tpu.memory_space<vmem>>, vector<2x8x8x4xf32>
    %73 = vector.shape_cast %72 : vector<2x8x8x4xf32> to vector<128x4xf32>
    %c7 = arith.constant 7 : index
    %c0_105 = arith.constant 0 : index
    %c0_106 = arith.constant 0 : index
    %74 = vector.load %arg2[%c7, %c0_105, %c0_106] : memref<9x4x8xf32, #tpu.memory_space<vmem>>, vector<1x4x8xf32>
    %75 = vector.shape_cast %74 : vector<1x4x8xf32> to vector<4x8xf32>
    %cst_107 = arith.constant dense<0.000000e+00> : vector<128x8xf32>
    %76 = tpu.matmul %73, %75, %cst_107 {dimension_numbers = #tpu.dot_dimension_numbers<[1], [0], [0], [1], [0, 0, 1, 1], [], []>} : vector<128x4xf32>, vector<4x8xf32>, vector<128x8xf32> -> vector<128x8xf32>
    %c0_108 = arith.constant 0 : index
    %c0_109 = arith.constant 0 : index
    %77 = vector.load %arg6[%c0_108, %c0_109] : memref<128x8xf32, #tpu.memory_space<vmem>>, vector<128x8xf32>
    %78 = arith.addf %77, %76 : vector<128x8xf32>
    %c0_110 = arith.constant 0 : index
    %c0_111 = arith.constant 0 : index
    %79 = vector.load %arg6[%c0_110, %c0_111] : memref<128x8xf32, #tpu.memory_space<vmem>>, vector<128x8xf32>
    tpu.vector_store %arg6[%c0_110, %c0_111], %78 {strides = array<i32>} : memref<128x8xf32, #tpu.memory_space<vmem>>, vector<128x8xf32>,
    %c0_112 = arith.constant 0 : index
    %c2_113 = arith.constant 2 : index
    %c2_114 = arith.constant 2 : index
    %c0_115 = arith.constant 0 : index
    %80 = vector.load %arg5[%c0_112, %c2_113, %c2_114, %c0_115] : memref<2x10x10x4xf32, #tpu.memory_space<vmem>>, vector<2x8x8x4xf32>
    %81 = vector.shape_cast %80 : vector<2x8x8x4xf32> to vector<128x4xf32>
    %c8 = arith.constant 8 : index
    %c0_116 = arith.constant 0 : index
    %c0_117 = arith.constant 0 : index
    %82 = vector.load %arg2[%c8, %c0_116, %c0_117] : memref<9x4x8xf32, #tpu.memory_space<vmem>>, vector<1x4x8xf32>
    %83 = vector.shape_cast %82 : vector<1x4x8xf32> to vector<4x8xf32>
    %cst_118 = arith.constant dense<0.000000e+00> : vector<128x8xf32>
    %84 = tpu.matmul %81, %83, %cst_118 {dimension_numbers = #tpu.dot_dimension_numbers<[1], [0], [0], [1], [0, 0, 1, 1], [], []>} : vector<128x4xf32>, vector<4x8xf32>, vector<128x8xf32> -> vector<128x8xf32>
    %c0_119 = arith.constant 0 : index
    %c0_120 = arith.constant 0 : index
    %85 = vector.load %arg6[%c0_119, %c0_120] : memref<128x8xf32, #tpu.memory_space<vmem>>, vector<128x8xf32>
    %86 = arith.addf %85, %84 : vector<128x8xf32>
    %c0_121 = arith.constant 0 : index
    %c0_122 = arith.constant 0 : index
    %87 = vector.load %arg6[%c0_121, %c0_122] : memref<128x8xf32, #tpu.memory_space<vmem>>, vector<128x8xf32>
    tpu.vector_store %arg6[%c0_121, %c0_122], %86 {strides = array<i32>} : memref<128x8xf32, #tpu.memory_space<vmem>>, vector<128x8xf32>,
    %c0_123 = arith.constant 0 : index
    %c0_124 = arith.constant 0 : index
    %88 = vector.load %arg6[%c0_123, %c0_124] : memref<128x8xf32, #tpu.memory_space<vmem>>, vector<128x8xf32>
    %c0_125 = arith.constant 0 : index
    %c0_126 = arith.constant 0 : index
    %89 = vector.load %arg3[%c0_125, %c0_126] : memref<1x8xf32, #tpu.memory_space<vmem>>, vector<1x8xf32>
    %90 = vector.broadcast %89 : vector<1x8xf32> to vector<128x8xf32>
    %91 = arith.addf %88, %90 : vector<128x8xf32>
    %c0_127 = arith.constant 0 : index
    %c0_128 = arith.constant 0 : index
    %92 = vector.load %arg4[%c0_127, %c0_128] : memref<128x8xf32, #tpu.memory_space<vmem>>, vector<128x8xf32>
    tpu.vector_store %arg4[%c0_127, %c0_128], %91 {strides = array<i32>} : memref<128x8xf32, #tpu.memory_space<vmem>>, vector<128x8xf32>,
    return
  }
  func.func @transform_0(%arg0: i32) -> (i32, i32, i32, i32, i32) {
    %c0_i32 = arith.constant 0 : i32
    %c0_i32_0 = arith.constant 0 : i32
    %c0_i32_1 = arith.constant 0 : i32
    %c0_i32_2 = arith.constant 0 : i32
    %c0_i32_3 = arith.constant 0 : i32
    return %arg0, %c0_i32, %c0_i32_0, %c0_i32_1, %c0_i32_2 : i32, i32, i32, i32, i32
  }
  func.func @transform_1(%arg0: i32) -> (i32, i32, i32) {
    %c0_i32 = arith.constant 0 : i32
    %c0_i32_0 = arith.constant 0 : i32
    %c0_i32_1 = arith.constant 0 : i32
    %c0_i32_2 = arith.constant 0 : i32
    return %c0_i32, %c0_i32_0, %c0_i32_1 : i32, i32, i32
  }
  func.func @transform_2(%arg0: i32) -> (i32, i32) {
    %c0_i32 = arith.constant 0 : i32
    %c0_i32_0 = arith.constant 0 : i32
    %c0_i32_1 = arith.constant 0 : i32
    return %c0_i32, %c0_i32_0 : i32, i32
  }
  func.func @transform_3(%arg0: i32) -> (i32, i32) {
    %c0_i32 = arith.constant 0 : i32
    %c0_i32_0 = arith.constant 0 : i32
    return %arg0, %c0_i32 : i32, i32
  }
}

</mosaic_0001>

<llo_original>
// kernel: tpu_custom_call.1
$region0: #{tpu_custom_call.1}
  #allocation0 [shape = 'u32[]', space=smem, size = 0x4, offset = 0x4, fixed_abs, tag = 'smem constant byte address 0x4 - core index']
  #allocation1 [shape = 'u32[72,128]{1,0:T(1,128)}', space=vmem, size = 0x9000, scoped, tag = 'internal scratch']
  #allocation2 [shape = 'f32[2,10,10,4]{3,2,1,0:T(8,128)}', space=vmem, size = 0x28000, scoped, tag = 'scratch operand']
  #allocation3 [shape = 'f32[128,8]{1,0:T(8,128)}', space=vmem, size = 0x10000, scoped, tag = 'scratch operand']
  %s0 = inlined_call_operand.hbm [shape: f32[2,8,2,8,8], index: 0, kind: input, shape index: {}]
  %s1 = inlined_call_operand.vmem [shape: f32[9,4,8], index: 1, kind: input, shape index: {}]
  %s2 = inlined_call_operand.vmem [shape: f32[1,8], index: 2, kind: input, shape index: {}]
  %s3 = inlined_call_operand.vmem [shape: f32[128,8], index: 3, kind: output, shape index: {}]
  %s4 = sld [smem:[#allocation0]]
  $region26: #{tpu_custom_call.1} parent=0
    _
  %s6 = ssub.s32 1, %s4
  %s7 = scalar_select 0, %s6, %s4
  $region1: #{tpu_custom_call.1} parent=0
    #allocation4 [shape = 'u8[131072]{0}', space=vmem, size = 0x20000, scoped, tag = 'input window, operand 0, single buffered']
    #allocation5 [shape = 's32[1]{0}', space=sflag, size = 0x4, scoped, tag = 'scoped memory for tpu_custom_call.1']
    %8 = vsyncpa [#allocation5], 0
    // Predicated region
    $region2: #{tpu_custom_call.1} parent=1 // pred_check
      _
    $region3: #{tpu_custom_call.1} parent=1 // pred_check_branch
      %10 = sbr.rel (0) target = $region5
    $region4: #{tpu_custom_call.1} parent=1 // pred_region
      %12 = vsyncadd [#allocation5], 0
      %s13 = sshll.u32 %s0, 4
      %s14 = int_to_ptr.hbm [resolvable:$true] %s13
      %s15 = sshll.u32 [#allocation4], 4
      %s16 = int_to_ptr.vmem [resolvable:$true] %s15
      %21 = dma.hbm_to_vmem [thread:$0]  %s14, 4096, %s16, [#allocation5], 128, 128, 8
    $region5: #{tpu_custom_call.1} parent=1 // pred_fallthru
      _
    // Predicated region
    $region6: #{tpu_custom_call.1} parent=1 // pred_check
      _
    $region7: #{tpu_custom_call.1} parent=1 // pred_check_branch
      %23 = sbr.rel (0) target = $region9
    $region8: #{tpu_custom_call.1} parent=1 // pred_region
      _
    $region9: #{tpu_custom_call.1} parent=1 // pred_fallthru
      _
    // Predicated region
    $region10: #{tpu_custom_call.1} parent=1 // pred_check
      _
    $region11: #{tpu_custom_call.1} parent=1 // pred_check_branch
      %25 = sbr.rel (0) target = $region13
    $region12: #{tpu_custom_call.1} parent=1 // pred_region
      _
    $region13: #{tpu_custom_call.1} parent=1 // pred_fallthru
      _
    // Predicated region
    $region14: #{tpu_custom_call.1} parent=1 // pred_check
      _
    $region15: #{tpu_custom_call.1} parent=1 // pred_check_branch
      %27 = sbr.rel (0) target = $region17
    $region16: #{tpu_custom_call.1} parent=1 // pred_region
      %29 = dma.done [#allocation5], 4096
    $region17: #{tpu_custom_call.1} parent=1 // pred_fallthru
      _
    %v30 = vld [vmem:[#allocation4] sm:$0xff]
    %v31 = vld [vmem:[#allocation4 + $0x8] sm:$0xff]
    %v32 = vld [vmem:[#allocation4 + $0x10] sm:$0xff]
    %v33 = vld [vmem:[#allocation4 + $0x18] sm:$0xff]
    %v34 = vld [vmem:[#allocation4 + $0x20] sm:$0xff]
    %v35 = vld [vmem:[#allocation4 + $0x28] sm:$0xff]
    %v36 = vld [vmem:[#allocation4 + $0x30] sm:$0xff]
    %v37 = vld [vmem:[#allocation4 + $0x38] sm:$0xff]
    %v38 = vld [vmem:[#allocation4 + $0x40] sm:$0xff]
    %v39 = vld [vmem:[#allocation4 + $0x48] sm:$0xff]
    %v40 = vld [vmem:[#allocation4 + $0x50] sm:$0xff]
    %v41 = vld [vmem:[#allocation4 + $0x58] sm:$0xff]
    %v42 = vld [vmem:[#allocation4 + $0x60] sm:$0xff]
    %v43 = vld [vmem:[#allocation4 + $0x68] sm:$0xff]
    %v44 = vld [vmem:[#allocation4 + $0x70] sm:$0xff]
    %v45 = vld [vmem:[#allocation4 + $0x78] sm:$0xff]
    %v46 = vld [vmem:[#allocation4 + $0x80] sm:$0xff]
    %v47 = vld [vmem:[#allocation4 + $0x88] sm:$0xff]
    %v48 = vld [vmem:[#allocation4 + $0x90] sm:$0xff]
    %v49 = vld [vmem:[#allocation4 + $0x98] sm:$0xff]
    %v50 = vld [vmem:[#allocation4 + $0xa0] sm:$0xff]
    %v51 = vld [vmem:[#allocation4 + $0xa8] sm:$0xff]
    %v52 = vld [vmem:[#allocation4 + $0xb0] sm:$0xff]
    %v53 = vld [vmem:[#allocation4 + $0xb8] sm:$0xff]
    %v54 = vld [vmem:[#allocation4 + $0xc0] sm:$0xff]
    %v55 = vld [vmem:[#allocation4 + $0xc8] sm:$0xff]
    %v56 = vld [vmem:[#allocation4 + $0xd0] sm:$0xff]
    %v57 = vld [vmem:[#allocation4 + $0xd8] sm:$0xff]
    %v58 = vld [vmem:[#allocation4 + $0xe0] sm:$0xff]
    %v59 = vld [vmem:[#allocation4 + $0xe8] sm:$0xff]
    %v60 = vld [vmem:[#allocation4 + $0xf0] sm:$0xff]
    %v61 = vld [vmem:[#allocation4 + $0xf8] sm:$0xff]
    %v62 = vadd.f32 %v30, %v31
    %v63 = vadd.f32 %v32, %v33
    %v64 = vadd.f32 %v34, %v35
    %v65 = vadd.f32 %v36, %v37
    %v66 = vadd.f32 %v38, %v39
    %v67 = vadd.f32 %v40, %v41
    %v68 = vadd.f32 %v42, %v43
    %v69 = vadd.f32 %v44, %v45
    %v70 = vadd.f32 %v46, %v47
    %v71 = vadd.f32 %v48, %v49
    %v72 = vadd.f32 %v50, %v51
    %v73 = vadd.f32 %v52, %v53
    %v74 = vadd.f32 %v54, %v55
    %v75 = vadd.f32 %v56, %v57
    %v76 = vadd.f32 %v58, %v59
    %v77 = vadd.f32 %v60, %v61
    %94 = vrot.lane.b32.xlu0 %v62, 124
    %v95 = vpop.permute.xlu0 %94
    %96 = vrot.lane.b32.xlu0 %v63, 124
    %v97 = vpop.permute.xlu0 %96
    %98 = vrot.lane.b32.xlu0 %v64, 124
    %v99 = vpop.permute.xlu0 %98
    %100 = vrot.lane.b32.xlu0 %v65, 124
    %v101 = vpop.permute.xlu0 %100
    %102 = vrot.lane.b32.xlu0 %v66, 124
    %v103 = vpop.permute.xlu0 %102
    %104 = vrot.lane.b32.xlu0 %v67, 124
    %v105 = vpop.permute.xlu0 %104
    %106 = vrot.lane.b32.xlu0 %v68, 124
    %v107 = vpop.permute.xlu0 %106
    %108 = vrot.lane.b32.xlu0 %v69, 124
    %v109 = vpop.permute.xlu0 %108
    %110 = vrot.lane.b32.xlu0 %v70, 124
    %v111 = vpop.permute.xlu0 %110
    %112 = vrot.lane.b32.xlu0 %v71, 124
    %v113 = vpop.permute.xlu0 %112
    %114 = vrot.lane.b32.xlu0 %v72, 124
    %v115 = vpop.permute.xlu0 %114
    %116 = vrot.lane.b32.xlu0 %v73, 124
    %v117 = vpop.permute.xlu0 %116
    %118 = vrot.lane.b32.xlu0 %v74, 124
    %v119 = vpop.permute.xlu0 %118
    %120 = vrot.lane.b32.xlu0 %v75, 124
    %v121 = vpop.permute.xlu0 %120
    %122 = vrot.lane.b32.xlu0 %v76, 124
    %v123 = vpop.permute.xlu0 %122
    %124 = vrot.lane.b32.xlu0 %v77, 124
    %v125 = vpop.permute.xlu0 %124
    %v142 = vadd.f32 %v62, %v95
    %v143 = vadd.f32 %v63, %v97
    %v144 = vadd.f32 %v64, %v99
    %v145 = vadd.f32 %v65, %v101
    %v146 = vadd.f32 %v66, %v103
    %v147 = vadd.f32 %v67, %v105
    %v148 = vadd.f32 %v68, %v107
    %v149 = vadd.f32 %v69, %v109
    %v150 = vadd.f32 %v70, %v111
    %v151 = vadd.f32 %v71, %v113
    %v152 = vadd.f32 %v72, %v115
    %v153 = vadd.f32 %v73, %v117
    %v154 = vadd.f32 %v74, %v119
    %v155 = vadd.f32 %v75, %v121
    %v156 = vadd.f32 %v76, %v123
    %v157 = vadd.f32 %v77, %v125
    %v158 = vmul.f32 %v142, 0.25
    %v159 = vmul.f32 %v143, 0.25
    %v160 = vmul.f32 %v144, 0.25
    %v161 = vmul.f32 %v145, 0.25
    %v162 = vmul.f32 %v146, 0.25
    %v163 = vmul.f32 %v147, 0.25
    %v164 = vmul.f32 %v148, 0.25
    %v165 = vmul.f32 %v149, 0.25
    %v166 = vmul.f32 %v150, 0.25
    %v167 = vmul.f32 %v151, 0.25
    %v168 = vmul.f32 %v152, 0.25
    %v169 = vmul.f32 %v153, 0.25
    %v170 = vmul.f32 %v154, 0.25
    %v171 = vmul.f32 %v155, 0.25
    %v172 = vmul.f32 %v156, 0.25
    %v173 = vmul.f32 %v157, 0.25
    %vm174 = vcmask 31744
    %175 = vst.msk [vmem:[#allocation2] sm:$0xff] %vm174, 0.0
    %vm176 = vcmask 25600
    %177 = vst.msk [vmem:[#allocation2 + $0x8] sm:$0x3] %vm176, 0.0
    %178 = vst.msk [vmem:[#allocation2 + $0xa0] sm:$0xff] %vm174, 0.0
    %179 = vst.msk [vmem:[#allocation2 + $0xa8] sm:$0x3] %vm176, 0.0
    %s180 = scalar_lea.vmem [#allocation2], 144
    %181 = vst.msk [vmem:[%s180] sm:$0xff] %vm174, 0.0
    %182 = vst.msk [vmem:[%s180 + $0x8] sm:$0x3] %vm176, 0.0
    %183 = vst.msk [vmem:[%s180 + $0xa0] sm:$0xff] %vm174, 0.0
    %184 = vst.msk [vmem:[%s180 + $0xa8] sm:$0x3] %vm176, 0.0
    %s185 = scalar_lea.vmem [#allocation2], 16
    %vm186 = vcmask 24576
    %187 = vst.msk [vmem:[%s185] sm:$0x1] %vm186, 0.0
    %188 = vst.msk [vmem:[%s185 + $0x10] sm:$0x1] %vm186, 0.0
    %189 = vst.msk [vmem:[%s185 + $0x20] sm:$0x1] %vm186, 0.0
    %190 = vst.msk [vmem:[%s185 + $0x30] sm:$0x1] %vm186, 0.0
    %191 = vst.msk [vmem:[%s185 + $0x40] sm:$0x1] %vm186, 0.0
    %192 = vst.msk [vmem:[%s185 + $0x50] sm:$0x1] %vm186, 0.0
    %193 = vst.msk [vmem:[%s185 + $0x60] sm:$0x1] %vm186, 0.0
    %194 = vst.msk [vmem:[%s185 + $0x70] sm:$0x1] %vm186, 0.0
    %195 = vst.msk [vmem:[%s185 + $0xa0] sm:$0x1] %vm186, 0.0
    %196 = vst.msk [vmem:[%s185 + $0xb0] sm:$0x1] %vm186, 0.0
    %197 = vst.msk [vmem:[%s185 + $0xc0] sm:$0x1] %vm186, 0.0
    %198 = vst.msk [vmem:[%s185 + $0xd0] sm:$0x1] %vm186, 0.0
    %199 = vst.msk [vmem:[%s185 + $0xe0] sm:$0x1] %vm186, 0.0
    %200 = vst.msk [vmem:[%s185 + $0xf0] sm:$0x1] %vm186, 0.0
    %201 = vst.msk [vmem:[%s185 + $0x100] sm:$0x1] %vm186, 0.0
    %202 = vst.msk [vmem:[%s185 + $0x110] sm:$0x1] %vm186, 0.0
    %203 = vst.msk [vmem:[%s185 + $0x9] sm:$0x1] %vm186, 0.0
    %204 = vst.msk [vmem:[%s185 + $0x19] sm:$0x1] %vm186, 0.0
    %205 = vst.msk [vmem:[%s185 + $0x29] sm:$0x1] %vm186, 0.0
    %206 = vst.msk [vmem:[%s185 + $0x39] sm:$0x1] %vm186, 0.0
    %207 = vst.msk [vmem:[%s185 + $0x49] sm:$0x1] %vm186, 0.0
    %208 = vst.msk [vmem:[%s185 + $0x59] sm:$0x1] %vm186, 0.0
    %209 = vst.msk [vmem:[%s185 + $0x69] sm:$0x1] %vm186, 0.0
    %210 = vst.msk [vmem:[%s185 + $0x79] sm:$0x1] %vm186, 0.0
    %211 = vst.msk [vmem:[%s185 + $0xa9] sm:$0x1] %vm186, 0.0
    %212 = vst.msk [vmem:[%s185 + $0xb9] sm:$0x1] %vm186, 0.0
    %213 = vst.msk [vmem:[%s185 + $0xc9] sm:$0x1] %vm186, 0.0
    %214 = vst.msk [vmem:[%s185 + $0xd9] sm:$0x1] %vm186, 0.0
    %215 = vst.msk [vmem:[%s185 + $0xe9] sm:$0x1] %vm186, 0.0
    %216 = vst.msk [vmem:[%s185 + $0xf9] sm:$0x1] %vm186, 0.0
    %217 = vst.msk [vmem:[%s185 + $0x109] sm:$0x1] %vm186, 0.0
    %218 = vst.msk [vmem:[%s185 + $0x119] sm:$0x1] %vm186, 0.0
    %219 = vst.msk [vmem:[%s185 + $0x1] sm:$0xff] %vm174, %v158
    %220 = vst.msk [vmem:[%s185 + $0x11] sm:$0xff] %vm174, %v159
    %221 = vst.msk [vmem:[%s185 + $0x21] sm:$0xff] %vm174, %v160
    %222 = vst.msk [vmem:[%s185 + $0x31] sm:$0xff] %vm174, %v161
    %223 = vst.msk [vmem:[%s185 + $0x41] sm:$0xff] %vm174, %v162
    %224 = vst.msk [vmem:[%s185 + $0x51] sm:$0xff] %vm174, %v163
    %225 = vst.msk [vmem:[%s185 + $0x61] sm:$0xff] %vm174, %v164
    %226 = vst.msk [vmem:[%s185 + $0x71] sm:$0xff] %vm174, %v165
    %227 = vst.msk [vmem:[%s185 + $0xa1] sm:$0xff] %vm174, %v166
    %228 = vst.msk [vmem:[%s185 + $0xb1] sm:$0xff] %vm174, %v167
    %229 = vst.msk [vmem:[%s185 + $0xc1] sm:$0xff] %vm174, %v168
    %230 = vst.msk [vmem:[%s185 + $0xd1] sm:$0xff] %vm174, %v169
    %231 = vst.msk [vmem:[%s185 + $0xe1] sm:$0xff] %vm174, %v170
    %232 = vst.msk [vmem:[%s185 + $0xf1] sm:$0xff] %vm174, %v171
    %233 = vst.msk [vmem:[%s185 + $0x101] sm:$0xff] %vm174, %v172
    %234 = vst.msk [vmem:[%s185 + $0x111] sm:$0xff] %vm174, %v173
    %v235 = vld [vmem:[#allocation2] sm:$0xff]
    %v236 = vld [vmem:[#allocation2 + $0x10] sm:$0xff]
    %v237 = vld [vmem:[#allocation2 + $0x20] sm:$0xff]
    %v238 = vld [vmem:[#allocation2 + $0x30] sm:$0xff]
    %v239 = vld [vmem:[#allocation2 + $0x40] sm:$0xff]
    %v240 = vld [vmem:[#allocation2 + $0x50] sm:$0xff]
    %v241 = vld [vmem:[#allocation2 + $0x60] sm:$0xff]
    %v242 = vld [vmem:[#allocation2 + $0x70] sm:$0xff]
    %v243 = vld [vmem:[#allocation2 + $0xa0] sm:$0xff]
    %v244 = vld [vmem:[#allocation2 + $0xb0] sm:$0xff]
    %v245 = vld [vmem:[#allocation2 + $0xc0] sm:$0xff]
    %v246 = vld [vmem:[#allocation2 + $0xd0] sm:$0xff]
    %v247 = vld [vmem:[#allocation2 + $0xe0] sm:$0xff]
    %v248 = vld [vmem:[#allocation2 + $0xf0] sm:$0xff]
    %v249 = vld [vmem:[#allocation2 + $0x100] sm:$0xff]
    %v250 = vld [vmem:[#allocation2 + $0x110] sm:$0xff]
    %v251 = vld [vmem:[%s1] sm:$0xf]
    %v253 = vsel %vm174, %v235, 0
    %v256 = vsel %vm174, %v236, 0
    %v259 = vsel %vm174, %v237, 0
    %v262 = vsel %vm174, %v238, 0
    %v265 = vsel %vm174, %v239, 0
    %v268 = vsel %vm174, %v240, 0
    %v271 = vsel %vm174, %v241, 0
    %v274 = vsel %vm174, %v242, 0
    %v277 = vsel %vm174, %v243, 0
    %v280 = vsel %vm174, %v244, 0
    %v283 = vsel %vm174, %v245, 0
    %v286 = vsel %vm174, %v246, 0
    %v289 = vsel %vm174, %v247, 0
    %v292 = vsel %vm174, %v248, 0
    %v295 = vsel %vm174, %v249, 0
    %v298 = vsel %vm174, %v250, 0
    %vm300 = vcmask 1043456
    %v302 = vsel %vm300, %v251, 0
    %304 = vmatpush.msra.mxu0 0.0
    %305 = vmatpush.msra.mxu0 0.0
    %306 = vmatpush.msra.mxu0 0.0
    %307 = vmatpush.msra.mxu0 0.0
    %308 = vmatpush.msra.mxu0 0.0
    %309 = vmatpush.msra.mxu0 0.0
    %310 = vmatpush.msra.mxu0 0.0
    %311 = vmatpush.msra.mxu0 0.0
    %312 = vmatpush.msra.mxu0 0.0
    %313 = vmatpush.msra.mxu0 0.0
    %314 = vmatpush.msra.mxu0 0.0
    %315 = vmatpush.msra.mxu0 0.0
    %316 = vmatpush.msra.mxu0 0.0
    %317 = vmatpush.msra.mxu0 0.0
    %318 = vmatpush.msra.mxu0 0.0
    %319 = vmatpush.msra.mxu0 %v302
    %320 = vmatmul.f32.gmra.mxu0 %v253
    %v321 = vpop.f32.mrf.mxu0
    %v322 = vadd.f32 0.0, %v321
    %323 = vmatmul.f32.gmra.mxu0 %v256
    %v324 = vpop.f32.mrf.mxu0
    %v325 = vadd.f32 0.0, %v324
    %326 = vmatmul.f32.gmra.mxu0 %v259
    %v327 = vpop.f32.mrf.mxu0
    %v328 = vadd.f32 0.0, %v327
    %329 = vmatmul.f32.gmra.mxu0 %v262
    %v330 = vpop.f32.mrf.mxu0
    %v331 = vadd.f32 0.0, %v330
    %332 = vmatmul.f32.gmra.mxu0 %v265
    %v333 = vpop.f32.mrf.mxu0
    %v334 = vadd.f32 0.0, %v333
    %335 = vmatmul.f32.gmra.mxu0 %v268
    %v336 = vpop.f32.mrf.mxu0
    %v337 = vadd.f32 0.0, %v336
    %338 = vmatmul.f32.gmra.mxu0 %v271
    %v339 = vpop.f32.mrf.mxu0
    %v340 = vadd.f32 0.0, %v339
    %341 = vmatmul.f32.gmra.mxu0 %v274
    %v342 = vpop.f32.mrf.mxu0
    %v343 = vadd.f32 0.0, %v342
    %344 = vmatmul.f32.gmra.mxu0 %v277
    %v345 = vpop.f32.mrf.mxu0
    %v346 = vadd.f32 0.0, %v345
    %347 = vmatmul.f32.gmra.mxu0 %v280
    %v348 = vpop.f32.mrf.mxu0
    %v349 = vadd.f32 0.0, %v348
    %350 = vmatmul.f32.gmra.mxu0 %v283
    %v351 = vpop.f32.mrf.mxu0
    %v352 = vadd.f32 0.0, %v351
    %353 = vmatmul.f32.gmra.mxu0 %v286
    %v354 = vpop.f32.mrf.mxu0
    %v355 = vadd.f32 0.0, %v354
    %356 = vmatmul.f32.gmra.mxu0 %v289
    %v357 = vpop.f32.mrf.mxu0
    %v358 = vadd.f32 0.0, %v357
    %359 = vmatmul.f32.gmra.mxu0 %v292
    %v360 = vpop.f32.mrf.mxu0
    %v361 = vadd.f32 0.0, %v360
    %362 = vmatmul.f32.gmra.mxu0 %v295
    %v363 = vpop.f32.mrf.mxu0
    %v364 = vadd.f32 0.0, %v363
    %365 = vmatmul.f32.gmra.mxu0 %v298
    %v366 = vpop.f32.mrf.mxu0
    %v367 = vadd.f32 0.0, %v366
    %368 = vdwg.mxu0
    %vm369 = vcmask 64512
    %370 = vst.msk [vmem:[#allocation3] sm:$0xff] %vm369, %v322
    %371 = vst.msk [vmem:[#allocation3 + $0x8] sm:$0xff] %vm369, %v325
    %372 = vst.msk [vmem:[#allocation3 + $0x10] sm:$0xff] %vm369, %v328
    %373 = vst.msk [vmem:[#allocation3 + $0x18] sm:$0xff] %vm369, %v331
    %374 = vst.msk [vmem:[#allocation3 + $0x20] sm:$0xff] %vm369, %v334
    %375 = vst.msk [vmem:[#allocation3 + $0x28] sm:$0xff] %vm369, %v337
    %376 = vst.msk [vmem:[#allocation3 + $0x30] sm:$0xff] %vm369, %v340
    %377 = vst.msk [vmem:[#allocation3 + $0x38] sm:$0xff] %vm369, %v343
    %378 = vst.msk [vmem:[#allocation3 + $0x40] sm:$0xff] %vm369, %v346
    %379 = vst.msk [vmem:[#allocation3 + $0x48] sm:$0xff] %vm369, %v349
    %380 = vst.msk [vmem:[#allocation3 + $0x50] sm:$0xff] %vm369, %v352
    %381 = vst.msk [vmem:[#allocation3 + $0x58] sm:$0xff] %vm369, %v355
    %382 = vst.msk [vmem:[#allocation3 + $0x60] sm:$0xff] %vm369, %v358
    %383 = vst.msk [vmem:[#allocation3 + $0x68] sm:$0xff] %vm369, %v361
    %384 = vst.msk [vmem:[#allocation3 + $0x70] sm:$0xff] %vm369, %v364
    %385 = vst.msk [vmem:[#allocation3 + $0x78] sm:$0xff] %vm369, %v367
    %v386 = vld [vmem:[#allocation2 + $0x1] sm:$0xff]
    %v387 = vld [vmem:[#allocation2 + $0x11] sm:$0xff]
    %v388 = vld [vmem:[#allocation2 + $0x21] sm:$0xff]
    %v389 = vld [vmem:[#allocation2 + $0x31] sm:$0xff]
    %v390 = vld [vmem:[#allocation2 + $0x41] sm:$0xff]
    %v391 = vld [vmem:[#allocation2 + $0x51] sm:$0xff]
    %v392 = vld [vmem:[#allocation2 + $0x61] sm:$0xff]
    %v393 = vld [vmem:[#allocation2 + $0x71] sm:$0xff]
    %v394 = vld [vmem:[#allocation2 + $0xa1] sm:$0xff]
    %v395 = vld [vmem:[#allocation2 + $0xb1] sm:$0xff]
    %v396 = vld [vmem:[#allocation2 + $0xc1] sm:$0xff]
    %v397 = vld [vmem:[#allocation2 + $0xd1] sm:$0xff]
    %v398 = vld [vmem:[#allocation2 + $0xe1] sm:$0xff]
    %v399 = vld [vmem:[#allocation2 + $0xf1] sm:$0xff]
    %v400 = vld [vmem:[#allocation2 + $0x101] sm:$0xff]
    %v401 = vld [vmem:[#allocation2 + $0x111] sm:$0xff]
    %s402 = scalar_lea.vmem %s1, 4
    %v403 = vld [vmem:[%s402] sm:$0xf]
    %v405 = vsel %vm174, %v386, 0
    %v408 = vsel %vm174, %v387, 0
    %v411 = vsel %vm174, %v388, 0
    %v414 = vsel %vm174, %v389, 0
    %v417 = vsel %vm174, %v390, 0
    %v420 = vsel %vm174, %v391, 0
    %v423 = vsel %vm174, %v392, 0
    %v426 = vsel %vm174, %v393, 0
    %v429 = vsel %vm174, %v394, 0
    %v432 = vsel %vm174, %v395, 0
    %v435 = vsel %vm174, %v396, 0
    %v438 = vsel %vm174, %v397, 0
    %v441 = vsel %vm174, %v398, 0
    %v444 = vsel %vm174, %v399, 0
    %v447 = vsel %vm174, %v400, 0
    %v450 = vsel %vm174, %v401, 0
    %v453 = vsel %vm300, %v403, 0
    %455 = vmatpush.msra.mxu0 0.0
    %456 = vmatpush.msra.mxu0 0.0
    %457 = vmatpush.msra.mxu0 0.0
    %458 = vmatpush.msra.mxu0 0.0
    %459 = vmatpush.msra.mxu0 0.0
    %460 = vmatpush.msra.mxu0 0.0
    %461 = vmatpush.msra.mxu0 0.0
    %462 = vmatpush.msra.mxu0 0.0
    %463 = vmatpush.msra.mxu0 0.0
    %464 = vmatpush.msra.mxu0 0.0
    %465 = vmatpush.msra.mxu0 0.0
    %466 = vmatpush.msra.mxu0 0.0
    %467 = vmatpush.msra.mxu0 0.0
    %468 = vmatpush.msra.mxu0 0.0
    %469 = vmatpush.msra.mxu0 0.0
    %470 = vmatpush.msra.mxu0 %v453
    %471 = vmatmul.f32.gmra.mxu0 %v405
    %v472 = vpop.f32.mrf.mxu0
    %v473 = vadd.f32 0.0, %v472
    %474 = vmatmul.f32.gmra.mxu0 %v408
    %v475 = vpop.f32.mrf.mxu0
    %v476 = vadd.f32 0.0, %v475
    %477 = vmatmul.f32.gmra.mxu0 %v411
    %v478 = vpop.f32.mrf.mxu0
    %v479 = vadd.f32 0.0, %v478
    %480 = vmatmul.f32.gmra.mxu0 %v414
    %v481 = vpop.f32.mrf.mxu0
    %v482 = vadd.f32 0.0, %v481
    %483 = vmatmul.f32.gmra.mxu0 %v417
    %v484 = vpop.f32.mrf.mxu0
    %v485 = vadd.f32 0.0, %v484
    %486 = vmatmul.f32.gmra.mxu0 %v420
    %v487 = vpop.f32.mrf.mxu0
    %v488 = vadd.f32 0.0, %v487
    %489 = vmatmul.f32.gmra.mxu0 %v423
    %v490 = vpop.f32.mrf.mxu0
    %v491 = vadd.f32 0.0, %v490
    %492 = vmatmul.f32.gmra.mxu0 %v426
    %v493 = vpop.f32.mrf.mxu0
    %v494 = vadd.f32 0.0, %v493
    %495 = vmatmul.f32.gmra.mxu0 %v429
    %v496 = vpop.f32.mrf.mxu0
    %v497 = vadd.f32 0.0, %v496
    %498 = vmatmul.f32.gmra.mxu0 %v432
    %v499 = vpop.f32.mrf.mxu0
    %v500 = vadd.f32 0.0, %v499
    %501 = vmatmul.f32.gmra.mxu0 %v435
    %v502 = vpop.f32.mrf.mxu0
    %v503 = vadd.f32 0.0, %v502
    %504 = vmatmul.f32.gmra.mxu0 %v438
    %v505 = vpop.f32.mrf.mxu0
    %v506 = vadd.f32 0.0, %v505
    %507 = vmatmul.f32.gmra.mxu0 %v441
    %v508 = vpop.f32.mrf.mxu0
    %v509 = vadd.f32 0.0, %v508
    %510 = vmatmul.f32.gmra.mxu0 %v444
    %v511 = vpop.f32.mrf.mxu0
    %v512 = vadd.f32 0.0, %v511
    %513 = vmatmul.f32.gmra.mxu0 %v447
    %v514 = vpop.f32.mrf.mxu0
    %v515 = vadd.f32 0.0, %v514
    %516 = vmatmul.f32.gmra.mxu0 %v450
    %v517 = vpop.f32.mrf.mxu0
    %v518 = vadd.f32 0.0, %v517
    %519 = vdwg.mxu0
    %v520 = vld [vmem:[#allocation3] sm:$0xff]
    %v521 = vld [vmem:[#allocation3 + $0x8] sm:$0xff]
    %v522 = vld [vmem:[#allocation3 + $0x10] sm:$0xff]
    %v523 = vld [vmem:[#allocation3 + $0x18] sm:$0xff]
    %v524 = vld [vmem:[#allocation3 + $0x20] sm:$0xff]
    %v525 = vld [vmem:[#allocation3 + $0x28] sm:$0xff]
    %v526 = vld [vmem:[#allocation3 + $0x30] sm:$0xff]
    %v527 = vld [vmem:[#allocation3 + $0x38] sm:$0xff]
    %v528 = vld [vmem:[#allocation3 + $0x40] sm:$0xff]
    %v529 = vld [vmem:[#allocation3 + $0x48] sm:$0xff]
    %v530 = vld [vmem:[#allocation3 + $0x50] sm:$0xff]
    %v531 = vld [vmem:[#allocation3 + $0x58] sm:$0xff]
    %v532 = vld [vmem:[#allocation3 + $0x60] sm:$0xff]
    %v533 = vld [vmem:[#allocation3 + $0x68] sm:$0xff]
    %v534 = vld [vmem:[#allocation3 + $0x70] sm:$0xff]
    %v535 = vld [vmem:[#allocation3 + $0x78] sm:$0xff]
    %v536 = vadd.f32 %v520, %v473
    %v537 = vadd.f32 %v521, %v476
    %v538 = vadd.f32 %v522, %v479
    %v539 = vadd.f32 %v523, %v482
    %v540 = vadd.f32 %v524, %v485
    %v541 = vadd.f32 %v525, %v488
    %v542 = vadd.f32 %v526, %v491
    %v543 = vadd.f32 %v527, %v494
    %v544 = vadd.f32 %v528, %v497
    %v545 = vadd.f32 %v529, %v500
    %v546 = vadd.f32 %v530, %v503
    %v547 = vadd.f32 %v531, %v506
    %v548 = vadd.f32 %v532, %v509
    %v549 = vadd.f32 %v533, %v512
    %v550 = vadd.f32 %v534, %v515
    %v551 = vadd.f32 %v535, %v518
    %552 = vst.msk [vmem:[#allocation3] sm:$0xff] %vm369, %v536
    %553 = vst.msk [vmem:[#allocation3 + $0x8] sm:$0xff] %vm369, %v537
    %554 = vst.msk [vmem:[#allocation3 + $0x10] sm:$0xff] %vm369, %v538
    %555 = vst.msk [vmem:[#allocation3 + $0x18] sm:$0xff] %vm369, %v539
    %556 = vst.msk [vmem:[#allocation3 + $0x20] sm:$0xff] %vm369, %v540
    %557 = vst.msk [vmem:[#allocation3 + $0x28] sm:$0xff] %vm369, %v541
    %558 = vst.msk [vmem:[#allocation3 + $0x30] sm:$0xff] %vm369, %v542
    %559 = vst.msk [vmem:[#allocation3 + $0x38] sm:$0xff] %vm369, %v543
    %560 = vst.msk [vmem:[#allocation3 + $0x40] sm:$0xff] %vm369, %v544
    %561 = vst.msk [vmem:[#allocation3 + $0x48] sm:$0xff] %vm369, %v545
    %562 = vst.msk [vmem:[#allocation3 + $0x50] sm:$0xff] %vm369, %v546
    %563 = vst.msk [vmem:[#allocation3 + $0x58] sm:$0xff] %vm369, %v547
    %564 = vst.msk [vmem:[#allocation3 + $0x60] sm:$0xff] %vm369, %v548
    %565 = vst.msk [vmem:[#allocation3 + $0x68] sm:$0xff] %vm369, %v549
    %566 = vst.msk [vmem:[#allocation3 + $0x70] sm:$0xff] %vm369, %v550
    %567 = vst.msk [vmem:[#allocation3 + $0x78] sm:$0xff] %vm369, %v551
    %v568 = vld [vmem:[#allocation2 + $0x2] sm:$0xff]
    %v569 = vld [vmem:[#allocation2 + $0x12] sm:$0xff]
    %v570 = vld [vmem:[#allocation2 + $0x22] sm:$0xff]
    %v571 = vld [vmem:[#allocation2 + $0x32] sm:$0xff]
    %v572 = vld [vmem:[#allocation2 + $0x42] sm:$0xff]
    %v573 = vld [vmem:[#allocation2 + $0x52] sm:$0xff]
    %v574 = vld [vmem:[#allocation2 + $0x62] sm:$0xff]
    %v575 = vld [vmem:[#allocation2 + $0x72] sm:$0xff]
    %v576 = vld [vmem:[#allocation2 + $0xa2] sm:$0xff]
    %v577 = vld [vmem:[#allocation2 + $0xb2] sm:$0xff]
    %v578 = vld [vmem:[#allocation2 + $0xc2] sm:$0xff]
    %v579 = vld [vmem:[#allocation2 + $0xd2] sm:$0xff]
    %v580 = vld [vmem:[#allocation2 + $0xe2] sm:$0xff]
    %v581 = vld [vmem:[#allocation2 + $0xf2] sm:$0xff]
    %v582 = vld [vmem:[#allocation2 + $0x102] sm:$0xff]
    %v583 = vld [vmem:[#allocation2 + $0x112] sm:$0xff]
    %s584 = scalar_lea.vmem %s1, 8
    %v585 = vld [vmem:[%s584] sm:$0xf]
    %v587 = vsel %vm174, %v568, 0
    %v590 = vsel %vm174, %v569, 0
    %v593 = vsel %vm174, %v570, 0
    %v596 = vsel %vm174, %v571, 0
    %v599 = vsel %vm174, %v572, 0
    %v602 = vsel %vm174, %v573, 0
    %v605 = vsel %vm174, %v574, 0
    %v608 = vsel %vm174, %v575, 0
    %v611 = vsel %vm174, %v576, 0
    %v614 = vsel %vm174, %v577, 0
    %v617 = vsel %vm174, %v578, 0
    %v620 = vsel %vm174, %v579, 0
    %v623 = vsel %vm174, %v580, 0
    %v626 = vsel %vm174, %v581, 0
    %v629 = vsel %vm174, %v582, 0
    %v632 = vsel %vm174, %v583, 0
    %v635 = vsel %vm300, %v585, 0
    %637 = vmatpush.msra.mxu0 0.0
    %638 = vmatpush.msra.mxu0 0.0
    %639 = vmatpush.msra.mxu0 0.0
    %640 = vmatpush.msra.mxu0 0.0
    %641 = vmatpush.msra.mxu0 0.0
    %642 = vmatpush.msra.mxu0 0.0
    %643 = vmatpush.msra.mxu0 0.0
    %644 = vmatpush.msra.mxu0 0.0
    %645 = vmatpush.msra.mxu0 0.0
    %646 = vmatpush.msra.mxu0 0.0
    %647 = vmatpush.msra.mxu0 0.0
    %648 = vmatpush.msra.mxu0 0.0
    %649 = vmatpush.msra.mxu0 0.0
    %650 = vmatpush.msra.mxu0 0.0
    %651 = vmatpush.msra.mxu0 0.0
    %652 = vmatpush.msra.mxu0 %v635
    %653 = vmatmul.f32.gmra.mxu0 %v587
    %v654 = vpop.f32.mrf.mxu0
    %v655 = vadd.f32 0.0, %v654
    %656 = vmatmul.f32.gmra.mxu0 %v590
    %v657 = vpop.f32.mrf.mxu0
    %v658 = vadd.f32 0.0, %v657
    %659 = vmatmul.f32.gmra.mxu0 %v593
    %v660 = vpop.f32.mrf.mxu0
    %v661 = vadd.f32 0.0, %v660
    %662 = vmatmul.f32.gmra.mxu0 %v596
    %v663 = vpop.f32.mrf.mxu0
    %v664 = vadd.f32 0.0, %v663
    %665 = vmatmul.f32.gmra.mxu0 %v599
    %v666 = vpop.f32.mrf.mxu0
    %v667 = vadd.f32 0.0, %v666
    %668 = vmatmul.f32.gmra.mxu0 %v602
    %v669 = vpop.f32.mrf.mxu0
    %v670 = vadd.f32 0.0, %v669
    %671 = vmatmul.f32.gmra.mxu0 %v605
    %v672 = vpop.f32.mrf.mxu0
    %v673 = vadd.f32 0.0, %v672
    %674 = vmatmul.f32.gmra.mxu0 %v608
    %v675 = vpop.f32.mrf.mxu0
    %v676 = vadd.f32 0.0, %v675
    %677 = vmatmul.f32.gmra.mxu0 %v611
    %v678 = vpop.f32.mrf.mxu0
    %v679 = vadd.f32 0.0, %v678
    %680 = vmatmul.f32.gmra.mxu0 %v614
    %v681 = vpop.f32.mrf.mxu0
    %v682 = vadd.f32 0.0, %v681
    %683 = vmatmul.f32.gmra.mxu0 %v617
    %v684 = vpop.f32.mrf.mxu0
    %v685 = vadd.f32 0.0, %v684
    %686 = vmatmul.f32.gmra.mxu0 %v620
    %v687 = vpop.f32.mrf.mxu0
    %v688 = vadd.f32 0.0, %v687
    %689 = vmatmul.f32.gmra.mxu0 %v623
    %v690 = vpop.f32.mrf.mxu0
    %v691 = vadd.f32 0.0, %v690
    %692 = vmatmul.f32.gmra.mxu0 %v626
    %v693 = vpop.f32.mrf.mxu0
    %v694 = vadd.f32 0.0, %v693
    %695 = vmatmul.f32.gmra.mxu0 %v629
    %v696 = vpop.f32.mrf.mxu0
    %v697 = vadd.f32 0.0, %v696
    %698 = vmatmul.f32.gmra.mxu0 %v632
    %v699 = vpop.f32.mrf.mxu0
    %v700 = vadd.f32 0.0, %v699
    %701 = vdwg.mxu0
    %v702 = vld [vmem:[#allocation3] sm:$0xff]
    %v703 = vld [vmem:[#allocation3 + $0x8] sm:$0xff]
    %v704 = vld [vmem:[#allocation3 + $0x10] sm:$0xff]
    %v705 = vld [vmem:[#allocation3 + $0x18] sm:$0xff]
    %v706 = vld [vmem:[#allocation3 + $0x20] sm:$0xff]
    %v707 = vld [vmem:[#allocation3 + $0x28] sm:$0xff]
    %v708 = vld [vmem:[#allocation3 + $0x30] sm:$0xff]
    %v709 = vld [vmem:[#allocation3 + $0x38] sm:$0xff]
    %v710 = vld [vmem:[#allocation3 + $0x40] sm:$0xff]
    %v711 = vld [vmem:[#allocation3 + $0x48] sm:$0xff]
    %v712 = vld [vmem:[#allocation3 + $0x50] sm:$0xff]
    %v713 = vld [vmem:[#allocation3 + $0x58] sm:$0xff]
    %v714 = vld [vmem:[#allocation3 + $0x60] sm:$0xff]
    %v715 = vld [vmem:[#allocation3 + $0x68] sm:$0xff]
    %v716 = vld [vmem:[#allocation3 + $0x70] sm:$0xff]
    %v717 = vld [vmem:[#allocation3 + $0x78] sm:$0xff]
    %v718 = vadd.f32 %v702, %v655
    %v719 = vadd.f32 %v703, %v658
    %v720 = vadd.f32 %v704, %v661
    %v721 = vadd.f32 %v705, %v664
    %v722 = vadd.f32 %v706, %v667
    %v723 = vadd.f32 %v707, %v670
    %v724 = vadd.f32 %v708, %v673
    %v725 = vadd.f32 %v709, %v676
    %v726 = vadd.f32 %v710, %v679
    %v727 = vadd.f32 %v711, %v682
    %v728 = vadd.f32 %v712, %v685
    %v729 = vadd.f32 %v713, %v688
    %v730 = vadd.f32 %v714, %v691
    %v731 = vadd.f32 %v715, %v694
    %v732 = vadd.f32 %v716, %v697
    %v733 = vadd.f32 %v717, %v700
    %734 = vst.msk [vmem:[#allocation3] sm:$0xff] %vm369, %v718
    %735 = vst.msk [vmem:[#allocation3 + $0x8] sm:$0xff] %vm369, %v719
    %736 = vst.msk [vmem:[#allocation3 + $0x10] sm:$0xff] %vm369, %v720
    %737 = vst.msk [vmem:[#allocation3 + $0x18] sm:$0xff] %vm369, %v721
    %738 = vst.msk [vmem:[#allocation3 + $0x20] sm:$0xff] %vm369, %v722
    %739 = vst.msk [vmem:[#allocation3 + $0x28] sm:$0xff] %vm369, %v723
    %740 = vst.msk [vmem:[#allocation3 + $0x30] sm:$0xff] %vm369, %v724
    %741 = vst.msk [vmem:[#allocation3 + $0x38] sm:$0xff] %vm369, %v725
    %742 = vst.msk [vmem:[#allocation3 + $0x40] sm:$0xff] %vm369, %v726
    %743 = vst.msk [vmem:[#allocation3 + $0x48] sm:$0xff] %vm369, %v727
    %744 = vst.msk [vmem:[#allocation3 + $0x50] sm:$0xff] %vm369, %v728
    %745 = vst.msk [vmem:[#allocation3 + $0x58] sm:$0xff] %vm369, %v729
    %746 = vst.msk [vmem:[#allocation3 + $0x60] sm:$0xff] %vm369, %v730
    %747 = vst.msk [vmem:[#allocation3 + $0x68] sm:$0xff] %vm369, %v731
    %748 = vst.msk [vmem:[#allocation3 + $0x70] sm:$0xff] %vm369, %v732
    %749 = vst.msk [vmem:[#allocation3 + $0x78] sm:$0xff] %vm369, %v733
    %v750 = vld [vmem:[%s185] sm:$0xff]
    %v751 = vld [vmem:[%s185 + $0x10] sm:$0xff]
    %v752 = vld [vmem:[%s185 + $0x20] sm:$0xff]
    %v753 = vld [vmem:[%s185 + $0x30] sm:$0xff]
    %v754 = vld [vmem:[%s185 + $0x40] sm:$0xff]
    %v755 = vld [vmem:[%s185 + $0x50] sm:$0xff]
    %v756 = vld [vmem:[%s185 + $0x60] sm:$0xff]
    %v757 = vld [vmem:[%s185 + $0x70] sm:$0xff]
    %v758 = vld [vmem:[%s185 + $0xa0] sm:$0xff]
    %v759 = vld [vmem:[%s185 + $0xb0] sm:$0xff]
    %v760 = vld [vmem:[%s185 + $0xc0] sm:$0xff]
    %v761 = vld [vmem:[%s185 + $0xd0] sm:$0xff]
    %v762 = vld [vmem:[%s185 + $0xe0] sm:$0xff]
    %v763 = vld [vmem:[%s185 + $0xf0] sm:$0xff]
    %v764 = vld [vmem:[%s185 + $0x100] sm:$0xff]
    %v765 = vld [vmem:[%s185 + $0x110] sm:$0xff]
    %s766 = scalar_lea.vmem %s1, 12
    %v767 = vld [vmem:[%s766] sm:$0xf]
    %v769 = vsel %vm174, %v750, 0
    %v772 = vsel %vm174, %v751, 0
    %v775 = vsel %vm174, %v752, 0
    %v778 = vsel %vm174, %v753, 0
    %v781 = vsel %vm174, %v754, 0
    %v784 = vsel %vm174, %v755, 0
    %v787 = vsel %vm174, %v756, 0
    %v790 = vsel %vm174, %v757, 0
    %v793 = vsel %vm174, %v758, 0
    %v796 = vsel %vm174, %v759, 0
    %v799 = vsel %vm174, %v760, 0
    %v802 = vsel %vm174, %v761, 0
    %v805 = vsel %vm174, %v762, 0
    %v808 = vsel %vm174, %v763, 0
    %v811 = vsel %vm174, %v764, 0
    %v814 = vsel %vm174, %v765, 0
    %v817 = vsel %vm300, %v767, 0
    %819 = vmatpush.msra.mxu0 0.0
    %820 = vmatpush.msra.mxu0 0.0
    %821 = vmatpush.msra.mxu0 0.0
    %822 = vmatpush.msra.mxu0 0.0
    %823 = vmatpush.msra.mxu0 0.0
    %824 = vmatpush.msra.mxu0 0.0
    %825 = vmatpush.msra.mxu0 0.0
    %826 = vmatpush.msra.mxu0 0.0
    %827 = vmatpush.msra.mxu0 0.0
    %828 = vmatpush.msra.mxu0 0.0
    %829 = vmatpush.msra.mxu0 0.0
    %830 = vmatpush.msra.mxu0 0.0
    %831 = vmatpush.msra.mxu0 0.0
    %832 = vmatpush.msra.mxu0 0.0
    %833 = vmatpush.msra.mxu0 0.0
    %834 = vmatpush.msra.mxu0 %v817
    %835 = vmatmul.f32.gmra.mxu0 %v769
    %v836 = vpop.f32.mrf.mxu0
    %v837 = vadd.f32 0.0, %v836
    %838 = vmatmul.f32.gmra.mxu0 %v772
    %v839 = vpop.f32.mrf.mxu0
    %v840 = vadd.f32 0.0, %v839
    %841 = vmatmul.f32.gmra.mxu0 %v775
    %v842 = vpop.f32.mrf.mxu0
    %v843 = vadd.f32 0.0, %v842
    %844 = vmatmul.f32.gmra.mxu0 %v778
    %v845 = vpop.f32.mrf.mxu0
    %v846 = vadd.f32 0.0, %v845
    %847 = vmatmul.f32.gmra.mxu0 %v781
    %v848 = vpop.f32.mrf.mxu0
    %v849 = vadd.f32 0.0, %v848
    %850 = vmatmul.f32.gmra.mxu0 %v784
    %v851 = vpop.f32.mrf.mxu0
    %v852 = vadd.f32 0.0, %v851
    %853 = vmatmul.f32.gmra.mxu0 %v787
    %v854 = vpop.f32.mrf.mxu0
    %v855 = vadd.f32 0.0, %v854
    %856 = vmatmul.f32.gmra.mxu0 %v790
    %v857 = vpop.f32.mrf.mxu0
    %v858 = vadd.f32 0.0, %v857
    %859 = vmatmul.f32.gmra.mxu0 %v793
    %v860 = vpop.f32.mrf.mxu0
    %v861 = vadd.f32 0.0, %v860
    %862 = vmatmul.f32.gmra.mxu0 %v796
    %v863 = vpop.f32.mrf.mxu0
    %v864 = vadd.f32 0.0, %v863
    %865 = vmatmul.f32.gmra.mxu0 %v799
    %v866 = vpop.f32.mrf.mxu0
    %v867 = vadd.f32 0.0, %v866
    %868 = vmatmul.f32.gmra.mxu0 %v802
    %v869 = vpop.f32.mrf.mxu0
    %v870 = vadd.f32 0.0, %v869
    %871 = vmatmul.f32.gmra.mxu0 %v805
    %v872 = vpop.f32.mrf.mxu0
    %v873 = vadd.f32 0.0, %v872
    %874 = vmatmul.f32.gmra.mxu0 %v808
    %v875 = vpop.f32.mrf.mxu0
    %v876 = vadd.f32 0.0, %v875
    %877 = vmatmul.f32.gmra.mxu0 %v811
    %v878 = vpop.f32.mrf.mxu0
    %v879 = vadd.f32 0.0, %v878
    %880 = vmatmul.f32.gmra.mxu0 %v814
    %v881 = vpop.f32.mrf.mxu0
    %v882 = vadd.f32 0.0, %v881
    %883 = vdwg.mxu0
    %v884 = vld [vmem:[#allocation3] sm:$0xff]
    %v885 = vld [vmem:[#allocation3 + $0x8] sm:$0xff]
    %v886 = vld [vmem:[#allocation3 + $0x10] sm:$0xff]
    %v887 = vld [vmem:[#allocation3 + $0x18] sm:$0xff]
    %v888 = vld [vmem:[#allocation3 + $0x20] sm:$0xff]
    %v889 = vld [vmem:[#allocation3 + $0x28] sm:$0xff]
    %v890 = vld [vmem:[#allocation3 + $0x30] sm:$0xff]
    %v891 = vld [vmem:[#allocation3 + $0x38] sm:$0xff]
    %v892 = vld [vmem:[#allocation3 + $0x40] sm:$0xff]
    %v893 = vld [vmem:[#allocation3 + $0x48] sm:$0xff]
    %v894 = vld [vmem:[#allocation3 + $0x50] sm:$0xff]
    %v895 = vld [vmem:[#allocation3 + $0x58] sm:$0xff]
    %v896 = vld [vmem:[#allocation3 + $0x60] sm:$0xff]
    %v897 = vld [vmem:[#allocation3 + $0x68] sm:$0xff]
    %v898 = vld [vmem:[#allocation3 + $0x70] sm:$0xff]
    %v899 = vld [vmem:[#allocation3 + $0x78] sm:$0xff]
    %v900 = vadd.f32 %v884, %v837
    %v901 = vadd.f32 %v885, %v840
    %v902 = vadd.f32 %v886, %v843
    %v903 = vadd.f32 %v887, %v846
    %v904 = vadd.f32 %v888, %v849
    %v905 = vadd.f32 %v889, %v852
    %v906 = vadd.f32 %v890, %v855
    %v907 = vadd.f32 %v891, %v858
    %v908 = vadd.f32 %v892, %v861
    %v909 = vadd.f32 %v893, %v864
    %v910 = vadd.f32 %v894, %v867
    %v911 = vadd.f32 %v895, %v870
    %v912 = vadd.f32 %v896, %v873
    %v913 = vadd.f32 %v897, %v876
    %v914 = vadd.f32 %v898, %v879
    %v915 = vadd.f32 %v899, %v882
    %916 = vst.msk [vmem:[#allocation3] sm:$0xff] %vm369, %v900
    %917 = vst.msk [vmem:[#allocation3 + $0x8] sm:$0xff] %vm369, %v901
    %918 = vst.msk [vmem:[#allocation3 + $0x10] sm:$0xff] %vm369, %v902
    %919 = vst.msk [vmem:[#allocation3 + $0x18] sm:$0xff] %vm369, %v903
    %920 = vst.msk [vmem:[#allocation3 + $0x20] sm:$0xff] %vm369, %v904
    %921 = vst.msk [vmem:[#allocation3 + $0x28] sm:$0xff] %vm369, %v905
    %922 = vst.msk [vmem:[#allocation3 + $0x30] sm:$0xff] %vm369, %v906
    %923 = vst.msk [vmem:[#allocation3 + $0x38] sm:$0xff] %vm369, %v907
    %924 = vst.msk [vmem:[#allocation3 + $0x40] sm:$0xff] %vm369, %v908
    %925 = vst.msk [vmem:[#allocation3 + $0x48] sm:$0xff] %vm369, %v909
    %926 = vst.msk [vmem:[#allocation3 + $0x50] sm:$0xff] %vm369, %v910
    %927 = vst.msk [vmem:[#allocation3 + $0x58] sm:$0xff] %vm369, %v911
    %928 = vst.msk [vmem:[#allocation3 + $0x60] sm:$0xff] %vm369, %v912
    %929 = vst.msk [vmem:[#allocation3 + $0x68] sm:$0xff] %vm369, %v913
    %930 = vst.msk [vmem:[#allocation3 + $0x70] sm:$0xff] %vm369, %v914
    %931 = vst.msk [vmem:[#allocation3 + $0x78] sm:$0xff] %vm369, %v915
    %v932 = vld [vmem:[%s185 + $0x1] sm:$0xff]
    %v933 = vld [vmem:[%s185 + $0x11] sm:$0xff]
    %v934 = vld [vmem:[%s185 + $0x21] sm:$0xff]
    %v935 = vld [vmem:[%s185 + $0x31] sm:$0xff]
    %v936 = vld [vmem:[%s185 + $0x41] sm:$0xff]
    %v937 = vld [vmem:[%s185 + $0x51] sm:$0xff]
    %v938 = vld [vmem:[%s185 + $0x61] sm:$0xff]
    %v939 = vld [vmem:[%s185 + $0x71] sm:$0xff]
    %v940 = vld [vmem:[%s185 + $0xa1] sm:$0xff]
    %v941 = vld [vmem:[%s185 + $0xb1] sm:$0xff]
    %v942 = vld [vmem:[%s185 + $0xc1] sm:$0xff]
    %v943 = vld [vmem:[%s185 + $0xd1] sm:$0xff]
    %v944 = vld [vmem:[%s185 + $0xe1] sm:$0xff]
    %v945 = vld [vmem:[%s185 + $0xf1] sm:$0xff]
    %v946 = vld [vmem:[%s185 + $0x101] sm:$0xff]
    %v947 = vld [vmem:[%s185 + $0x111] sm:$0xff]
    %s948 = scalar_lea.vmem %s1, 16
    %v949 = vld [vmem:[%s948] sm:$0xf]
    %v951 = vsel %vm174, %v932, 0
    %v954 = vsel %vm174, %v933, 0
    %v957 = vsel %vm174, %v934, 0
    %v960 = vsel %vm174, %v935, 0
    %v963 = vsel %vm174, %v936, 0
    %v966 = vsel %vm174, %v937, 0
    %v969 = vsel %vm174, %v938, 0
    %v972 = vsel %vm174, %v939, 0
    %v975 = vsel %vm174, %v940, 0
    %v978 = vsel %vm174, %v941, 0
    %v981 = vsel %vm174, %v942, 0
    %v984 = vsel %vm174, %v943, 0
    %v987 = vsel %vm174, %v944, 0
    %v990 = vsel %vm174, %v945, 0
    %v993 = vsel %vm174, %v946, 0
    %v996 = vsel %vm174, %v947, 0
    %v999 = vsel %vm300, %v949, 0
    %1001 = vmatpush.msra.mxu0 0.0
    %1002 = vmatpush.msra.mxu0 0.0
    %1003 = vmatpush.msra.mxu0 0.0
    %1004 = vmatpush.msra.mxu0 0.0
    %1005 = vmatpush.msra.mxu0 0.0
    %1006 = vmatpush.msra.mxu0 0.0
    %1007 = vmatpush.msra.mxu0 0.0
    %1008 = vmatpush.msra.mxu0 0.0
    %1009 = vmatpush.msra.mxu0 0.0
    %1010 = vmatpush.msra.mxu0 0.0
    %1011 = vmatpush.msra.mxu0 0.0
    %1012 = vmatpush.msra.mxu0 0.0
    %1013 = vmatpush.msra.mxu0 0.0
    %1014 = vmatpush.msra.mxu0 0.0
    %1015 = vmatpush.msra.mxu0 0.0
    %1016 = vmatpush.msra.mxu0 %v999
    %1017 = vmatmul.f32.gmra.mxu0 %v951
    %v1018 = vpop.f32.mrf.mxu0
    %v1019 = vadd.f32 0.0, %v1018
    %1020 = vmatmul.f32.gmra.mxu0 %v954
    %v1021 = vpop.f32.mrf.mxu0
    %v1022 = vadd.f32 0.0, %v1021
    %1023 = vmatmul.f32.gmra.mxu0 %v957
    %v1024 = vpop.f32.mrf.mxu0
    %v1025 = vadd.f32 0.0, %v1024
    %1026 = vmatmul.f32.gmra.mxu0 %v960
    %v1027 = vpop.f32.mrf.mxu0
    %v1028 = vadd.f32 0.0, %v1027
    %1029 = vmatmul.f32.gmra.mxu0 %v963
    %v1030 = vpop.f32.mrf.mxu0
    %v1031 = vadd.f32 0.0, %v1030
    %1032 = vmatmul.f32.gmra.mxu0 %v966
    %v1033 = vpop.f32.mrf.mxu0
    %v1034 = vadd.f32 0.0, %v1033
    %1035 = vmatmul.f32.gmra.mxu0 %v969
    %v1036 = vpop.f32.mrf.mxu0
    %v1037 = vadd.f32 0.0, %v1036
    %1038 = vmatmul.f32.gmra.mxu0 %v972
    %v1039 = vpop.f32.mrf.mxu0
    %v1040 = vadd.f32 0.0, %v1039
    %1041 = vmatmul.f32.gmra.mxu0 %v975
    %v1042 = vpop.f32.mrf.mxu0
    %v1043 = vadd.f32 0.0, %v1042
    %1044 = vmatmul.f32.gmra.mxu0 %v978
    %v1045 = vpop.f32.mrf.mxu0
    %v1046 = vadd.f32 0.0, %v1045
    %1047 = vmatmul.f32.gmra.mxu0 %v981
    %v1048 = vpop.f32.mrf.mxu0
    %v1049 = vadd.f32 0.0, %v1048
    %1050 = vmatmul.f32.gmra.mxu0 %v984
    %v1051 = vpop.f32.mrf.mxu0
    %v1052 = vadd.f32 0.0, %v1051
    %1053 = vmatmul.f32.gmra.mxu0 %v987
    %v1054 = vpop.f32.mrf.mxu0
    %v1055 = vadd.f32 0.0, %v1054
    %1056 = vmatmul.f32.gmra.mxu0 %v990
    %v1057 = vpop.f32.mrf.mxu0
    %v1058 = vadd.f32 0.0, %v1057
    %1059 = vmatmul.f32.gmra.mxu0 %v993
    %v1060 = vpop.f32.mrf.mxu0
    %v1061 = vadd.f32 0.0, %v1060
    %1062 = vmatmul.f32.gmra.mxu0 %v996
    %v1063 = vpop.f32.mrf.mxu0
    %v1064 = vadd.f32 0.0, %v1063
    %1065 = vdwg.mxu0
    %v1066 = vld [vmem:[#allocation3] sm:$0xff]
    %v1067 = vld [vmem:[#allocation3 + $0x8] sm:$0xff]
    %v1068 = vld [vmem:[#allocation3 + $0x10] sm:$0xff]
    %v1069 = vld [vmem:[#allocation3 + $0x18] sm:$0xff]
    %v1070 = vld [vmem:[#allocation3 + $0x20] sm:$0xff]
    %v1071 = vld [vmem:[#allocation3 + $0x28] sm:$0xff]
    %v1072 = vld [vmem:[#allocation3 + $0x30] sm:$0xff]
    %v1073 = vld [vmem:[#allocation3 + $0x38] sm:$0xff]
    %v1074 = vld [vmem:[#allocation3 + $0x40] sm:$0xff]
    %v1075 = vld [vmem:[#allocation3 + $0x48] sm:$0xff]
    %v1076 = vld [vmem:[#allocation3 + $0x50] sm:$0xff]
    %v1077 = vld [vmem:[#allocation3 + $0x58] sm:$0xff]
    %v1078 = vld [vmem:[#allocation3 + $0x60] sm:$0xff]
    %v1079 = vld [vmem:[#allocation3 + $0x68] sm:$0xff]
    %v1080 = vld [vmem:[#allocation3 + $0x70] sm:$0xff]
    %v1081 = vld [vmem:[#allocation3 + $0x78] sm:$0xff]
    %v1082 = vadd.f32 %v1066, %v1019
    %v1083 = vadd.f32 %v1067, %v1022
    %v1084 = vadd.f32 %v1068, %v1025
    %v1085 = vadd.f32 %v1069, %v1028
    %v1086 = vadd.f32 %v1070, %v1031
    %v1087 = vadd.f32 %v1071, %v1034
    %v1088 = vadd.f32 %v1072, %v1037
    %v1089 = vadd.f32 %v1073, %v1040
    %v1090 = vadd.f32 %v1074, %v1043
    %v1091 = vadd.f32 %v1075, %v1046
    %v1092 = vadd.f32 %v1076, %v1049
    %v1093 = vadd.f32 %v1077, %v1052
    %v1094 = vadd.f32 %v1078, %v1055
    %v1095 = vadd.f32 %v1079, %v1058
    %v1096 = vadd.f32 %v1080, %v1061
    %v1097 = vadd.f32 %v1081, %v1064
    %1098 = vst.msk [vmem:[#allocation3] sm:$0xff] %vm369, %v1082
    %1099 = vst.msk [vmem:[#allocation3 + $0x8] sm:$0xff] %vm369, %v1083
    %1100 = vst.msk [vmem:[#allocation3 + $0x10] sm:$0xff] %vm369, %v1084
    %1101 = vst.msk [vmem:[#allocation3 + $0x18] sm:$0xff] %vm369, %v1085
    %1102 = vst.msk [vmem:[#allocation3 + $0x20] sm:$0xff] %vm369, %v1086
    %1103 = vst.msk [vmem:[#allocation3 + $0x28] sm:$0xff] %vm369, %v1087
    %1104 = vst.msk [vmem:[#allocation3 + $0x30] sm:$0xff] %vm369, %v1088
    %1105 = vst.msk [vmem:[#allocation3 + $0x38] sm:$0xff] %vm369, %v1089
    %1106 = vst.msk [vmem:[#allocation3 + $0x40] sm:$0xff] %vm369, %v1090
    %1107 = vst.msk [vmem:[#allocation3 + $0x48] sm:$0xff] %vm369, %v1091
    %1108 = vst.msk [vmem:[#allocation3 + $0x50] sm:$0xff] %vm369, %v1092
    %1109 = vst.msk [vmem:[#allocation3 + $0x58] sm:$0xff] %vm369, %v1093
    %1110 = vst.msk [vmem:[#allocation3 + $0x60] sm:$0xff] %vm369, %v1094
    %1111 = vst.msk [vmem:[#allocation3 + $0x68] sm:$0xff] %vm369, %v1095
    %1112 = vst.msk [vmem:[#allocation3 + $0x70] sm:$0xff] %vm369, %v1096
    %1113 = vst.msk [vmem:[#allocation3 + $0x78] sm:$0xff] %vm369, %v1097
    %v1114 = vld [vmem:[%s185 + $0x2] sm:$0xff]
    %v1115 = vld [vmem:[%s185 + $0x12] sm:$0xff]
    %v1116 = vld [vmem:[%s185 + $0x22] sm:$0xff]
    %v1117 = vld [vmem:[%s185 + $0x32] sm:$0xff]
    %v1118 = vld [vmem:[%s185 + $0x42] sm:$0xff]
    %v1119 = vld [vmem:[%s185 + $0x52] sm:$0xff]
    %v1120 = vld [vmem:[%s185 + $0x62] sm:$0xff]
    %v1121 = vld [vmem:[%s185 + $0x72] sm:$0xff]
    %v1122 = vld [vmem:[%s185 + $0xa2] sm:$0xff]
    %v1123 = vld [vmem:[%s185 + $0xb2] sm:$0xff]
    %v1124 = vld [vmem:[%s185 + $0xc2] sm:$0xff]
    %v1125 = vld [vmem:[%s185 + $0xd2] sm:$0xff]
    %v1126 = vld [vmem:[%s185 + $0xe2] sm:$0xff]
    %v1127 = vld [vmem:[%s185 + $0xf2] sm:$0xff]
    %v1128 = vld [vmem:[%s185 + $0x102] sm:$0xff]
    %v1129 = vld [vmem:[%s185 + $0x112] sm:$0xff]
    %s1130 = scalar_lea.vmem %s1, 20
    %v1131 = vld [vmem:[%s1130] sm:$0xf]
    %v1133 = vsel %vm174, %v1114, 0
    %v1136 = vsel %vm174, %v1115, 0
    %v1139 = vsel %vm174, %v1116, 0
    %v1142 = vsel %vm174, %v1117, 0
    %v1145 = vsel %vm174, %v1118, 0
    %v1148 = vsel %vm174, %v1119, 0
    %v1151 = vsel %vm174, %v1120, 0
    %v1154 = vsel %vm174, %v1121, 0
    %v1157 = vsel %vm174, %v1122, 0
    %v1160 = vsel %vm174, %v1123, 0
    %v1163 = vsel %vm174, %v1124, 0
    %v1166 = vsel %vm174, %v1125, 0
    %v1169 = vsel %vm174, %v1126, 0
    %v1172 = vsel %vm174, %v1127, 0
    %v1175 = vsel %vm174, %v1128, 0
    %v1178 = vsel %vm174, %v1129, 0
    %v1181 = vsel %vm300, %v1131, 0
    %1183 = vmatpush.msra.mxu0 0.0
    %1184 = vmatpush.msra.mxu0 0.0
    %1185 = vmatpush.msra.mxu0 0.0
    %1186 = vmatpush.msra.mxu0 0.0
    %1187 = vmatpush.msra.mxu0 0.0
    %1188 = vmatpush.msra.mxu0 0.0
    %1189 = vmatpush.msra.mxu0 0.0
    %1190 = vmatpush.msra.mxu0 0.0
    %1191 = vmatpush.msra.mxu0 0.0
    %1192 = vmatpush.msra.mxu0 0.0
    %1193 = vmatpush.msra.mxu0 0.0
    %1194 = vmatpush.msra.mxu0 0.0
    %1195 = vmatpush.msra.mxu0 0.0
    %1196 = vmatpush.msra.mxu0 0.0
    %1197 = vmatpush.msra.mxu0 0.0
    %1198 = vmatpush.msra.mxu0 %v1181
    %1199 = vmatmul.f32.gmra.mxu0 %v1133
    %v1200 = vpop.f32.mrf.mxu0
    %v1201 = vadd.f32 0.0, %v1200
    %1202 = vmatmul.f32.gmra.mxu0 %v1136
    %v1203 = vpop.f32.mrf.mxu0
    %v1204 = vadd.f32 0.0, %v1203
    %1205 = vmatmul.f32.gmra.mxu0 %v1139
    %v1206 = vpop.f32.mrf.mxu0
    %v1207 = vadd.f32 0.0, %v1206
    %1208 = vmatmul.f32.gmra.mxu0 %v1142
    %v1209 = vpop.f32.mrf.mxu0
    %v1210 = vadd.f32 0.0, %v1209
    %1211 = vmatmul.f32.gmra.mxu0 %v1145
    %v1212 = vpop.f32.mrf.mxu0
    %v1213 = vadd.f32 0.0, %v1212
    %1214 = vmatmul.f32.gmra.mxu0 %v1148
    %v1215 = vpop.f32.mrf.mxu0
    %v1216 = vadd.f32 0.0, %v1215
    %1217 = vmatmul.f32.gmra.mxu0 %v1151
    %v1218 = vpop.f32.mrf.mxu0
    %v1219 = vadd.f32 0.0, %v1218
    %1220 = vmatmul.f32.gmra.mxu0 %v1154
    %v1221 = vpop.f32.mrf.mxu0
    %v1222 = vadd.f32 0.0, %v1221
    %1223 = vmatmul.f32.gmra.mxu0 %v1157
    %v1224 = vpop.f32.mrf.mxu0
    %v1225 = vadd.f32 0.0, %v1224
    %1226 = vmatmul.f32.gmra.mxu0 %v1160
    %v1227 = vpop.f32.mrf.mxu0
    %v1228 = vadd.f32 0.0, %v1227
    %1229 = vmatmul.f32.gmra.mxu0 %v1163
    %v1230 = vpop.f32.mrf.mxu0
    %v1231 = vadd.f32 0.0, %v1230
    %1232 = vmatmul.f32.gmra.mxu0 %v1166
    %v1233 = vpop.f32.mrf.mxu0
    %v1234 = vadd.f32 0.0, %v1233
    %1235 = vmatmul.f32.gmra.mxu0 %v1169
    %v1236 = vpop.f32.mrf.mxu0
    %v1237 = vadd.f32 0.0, %v1236
    %1238 = vmatmul.f32.gmra.mxu0 %v1172
    %v1239 = vpop.f32.mrf.mxu0
    %v1240 = vadd.f32 0.0, %v1239
    %1241 = vmatmul.f32.gmra.mxu0 %v1175
    %v1242 = vpop.f32.mrf.mxu0
    %v1243 = vadd.f32 0.0, %v1242
    %1244 = vmatmul.f32.gmra.mxu0 %v1178
    %v1245 = vpop.f32.mrf.mxu0
    %v1246 = vadd.f32 0.0, %v1245
    %1247 = vdwg.mxu0
    %v1248 = vld [vmem:[#allocation3] sm:$0xff]
    %v1249 = vld [vmem:[#allocation3 + $0x8] sm:$0xff]
    %v1250 = vld [vmem:[#allocation3 + $0x10] sm:$0xff]
    %v1251 = vld [vmem:[#allocation3 + $0x18] sm:$0xff]
    %v1252 = vld [vmem:[#allocation3 + $0x20] sm:$0xff]
    %v1253 = vld [vmem:[#allocation3 + $0x28] sm:$0xff]
    %v1254 = vld [vmem:[#allocation3 + $0x30] sm:$0xff]
    %v1255 = vld [vmem:[#allocation3 + $0x38] sm:$0xff]
    %v1256 = vld [vmem:[#allocation3 + $0x40] sm:$0xff]
    %v1257 = vld [vmem:[#allocation3 + $0x48] sm:$0xff]
    %v1258 = vld [vmem:[#allocation3 + $0x50] sm:$0xff]
    %v1259 = vld [vmem:[#allocation3 + $0x58] sm:$0xff]
    %v1260 = vld [vmem:[#allocation3 + $0x60] sm:$0xff]
    %v1261 = vld [vmem:[#allocation3 + $0x68] sm:$0xff]
    %v1262 = vld [vmem:[#allocation3 + $0x70] sm:$0xff]
    %v1263 = vld [vmem:[#allocation3 + $0x78] sm:$0xff]
    %v1264 = vadd.f32 %v1248, %v1201
    %v1265 = vadd.f32 %v1249, %v1204
    %v1266 = vadd.f32 %v1250, %v1207
    %v1267 = vadd.f32 %v1251, %v1210
    %v1268 = vadd.f32 %v1252, %v1213
    %v1269 = vadd.f32 %v1253, %v1216
    %v1270 = vadd.f32 %v1254, %v1219
    %v1271 = vadd.f32 %v1255, %v1222
    %v1272 = vadd.f32 %v1256, %v1225
    %v1273 = vadd.f32 %v1257, %v1228
    %v1274 = vadd.f32 %v1258, %v1231
    %v1275 = vadd.f32 %v1259, %v1234
    %v1276 = vadd.f32 %v1260, %v1237
    %v1277 = vadd.f32 %v1261, %v1240
    %v1278 = vadd.f32 %v1262, %v1243
    %v1279 = vadd.f32 %v1263, %v1246
    %1280 = vst.msk [vmem:[#allocation3] sm:$0xff] %vm369, %v1264
    %1281 = vst.msk [vmem:[#allocation3 + $0x8] sm:$0xff] %vm369, %v1265
    %1282 = vst.msk [vmem:[#allocation3 + $0x10] sm:$0xff] %vm369, %v1266
    %1283 = vst.msk [vmem:[#allocation3 + $0x18] sm:$0xff] %vm369, %v1267
    %1284 = vst.msk [vmem:[#allocation3 + $0x20] sm:$0xff] %vm369, %v1268
    %1285 = vst.msk [vmem:[#allocation3 + $0x28] sm:$0xff] %vm369, %v1269
    %1286 = vst.msk [vmem:[#allocation3 + $0x30] sm:$0xff] %vm369, %v1270
    %1287 = vst.msk [vmem:[#allocation3 + $0x38] sm:$0xff] %vm369, %v1271
    %1288 = vst.msk [vmem:[#allocation3 + $0x40] sm:$0xff] %vm369, %v1272
    %1289 = vst.msk [vmem:[#allocation3 + $0x48] sm:$0xff] %vm369, %v1273
    %1290 = vst.msk [vmem:[#allocation3 + $0x50] sm:$0xff] %vm369, %v1274
    %1291 = vst.msk [vmem:[#allocation3 + $0x58] sm:$0xff] %vm369, %v1275
    %1292 = vst.msk [vmem:[#allocation3 + $0x60] sm:$0xff] %vm369, %v1276
    %1293 = vst.msk [vmem:[#allocation3 + $0x68] sm:$0xff] %vm369, %v1277
    %1294 = vst.msk [vmem:[#allocation3 + $0x70] sm:$0xff] %vm369, %v1278
    %1295 = vst.msk [vmem:[#allocation3 + $0x78] sm:$0xff] %vm369, %v1279
    %s1296 = scalar_lea.vmem [#allocation2], 32
    %v1297 = vld [vmem:[%s1296] sm:$0xff]
    %v1298 = vld [vmem:[%s1296 + $0x10] sm:$0xff]
    %v1299 = vld [vmem:[%s1296 + $0x20] sm:$0xff]
    %v1300 = vld [vmem:[%s1296 + $0x30] sm:$0xff]
    %v1301 = vld [vmem:[%s1296 + $0x40] sm:$0xff]
    %v1302 = vld [vmem:[%s1296 + $0x50] sm:$0xff]
    %v1303 = vld [vmem:[%s1296 + $0x60] sm:$0xff]
    %v1304 = vld [vmem:[%s1296 + $0x70] sm:$0xff]
    %v1305 = vld [vmem:[%s1296 + $0xa0] sm:$0xff]
    %v1306 = vld [vmem:[%s1296 + $0xb0] sm:$0xff]
    %v1307 = vld [vmem:[%s1296 + $0xc0] sm:$0xff]
    %v1308 = vld [vmem:[%s1296 + $0xd0] sm:$0xff]
    %v1309 = vld [vmem:[%s1296 + $0xe0] sm:$0xff]
    %v1310 = vld [vmem:[%s1296 + $0xf0] sm:$0xff]
    %v1311 = vld [vmem:[%s1296 + $0x100] sm:$0xff]
    %v1312 = vld [vmem:[%s1296 + $0x110] sm:$0xff]
    %s1313 = scalar_lea.vmem %s1, 24
    %v1314 = vld [vmem:[%s1313] sm:$0xf]
    %v1316 = vsel %vm174, %v1297, 0
    %v1319 = vsel %vm174, %v1298, 0
    %v1322 = vsel %vm174, %v1299, 0
    %v1325 = vsel %vm174, %v1300, 0
    %v1328 = vsel %vm174, %v1301, 0
    %v1331 = vsel %vm174, %v1302, 0
    %v1334 = vsel %vm174, %v1303, 0
    %v1337 = vsel %vm174, %v1304, 0
    %v1340 = vsel %vm174, %v1305, 0
    %v1343 = vsel %vm174, %v1306, 0
    %v1346 = vsel %vm174, %v1307, 0
    %v1349 = vsel %vm174, %v1308, 0
    %v1352 = vsel %vm174, %v1309, 0
    %v1355 = vsel %vm174, %v1310, 0
    %v1358 = vsel %vm174, %v1311, 0
    %v1361 = vsel %vm174, %v1312, 0
    %v1364 = vsel %vm300, %v1314, 0
    %1366 = vmatpush.msra.mxu0 0.0
    %1367 = vmatpush.msra.mxu0 0.0
    %1368 = vmatpush.msra.mxu0 0.0
    %1369 = vmatpush.msra.mxu0 0.0
    %1370 = vmatpush.msra.mxu0 0.0
    %1371 = vmatpush.msra.mxu0 0.0
    %1372 = vmatpush.msra.mxu0 0.0
    %1373 = vmatpush.msra.mxu0 0.0
    %1374 = vmatpush.msra.mxu0 0.0
    %1375 = vmatpush.msra.mxu0 0.0
    %1376 = vmatpush.msra.mxu0 0.0
    %1377 = vmatpush.msra.mxu0 0.0
    %1378 = vmatpush.msra.mxu0 0.0
    %1379 = vmatpush.msra.mxu0 0.0
    %1380 = vmatpush.msra.mxu0 0.0
    %1381 = vmatpush.msra.mxu0 %v1364
    %1382 = vmatmul.f32.gmra.mxu0 %v1316
    %v1383 = vpop.f32.mrf.mxu0
    %v1384 = vadd.f32 0.0, %v1383
    %1385 = vmatmul.f32.gmra.mxu0 %v1319
    %v1386 = vpop.f32.mrf.mxu0
    %v1387 = vadd.f32 0.0, %v1386
    %1388 = vmatmul.f32.gmra.mxu0 %v1322
    %v1389 = vpop.f32.mrf.mxu0
    %v1390 = vadd.f32 0.0, %v1389
    %1391 = vmatmul.f32.gmra.mxu0 %v1325
    %v1392 = vpop.f32.mrf.mxu0
    %v1393 = vadd.f32 0.0, %v1392
    %1394 = vmatmul.f32.gmra.mxu0 %v1328
    %v1395 = vpop.f32.mrf.mxu0
    %v1396 = vadd.f32 0.0, %v1395
    %1397 = vmatmul.f32.gmra.mxu0 %v1331
    %v1398 = vpop.f32.mrf.mxu0
    %v1399 = vadd.f32 0.0, %v1398
    %1400 = vmatmul.f32.gmra.mxu0 %v1334
    %v1401 = vpop.f32.mrf.mxu0
    %v1402 = vadd.f32 0.0, %v1401
    %1403 = vmatmul.f32.gmra.mxu0 %v1337
    %v1404 = vpop.f32.mrf.mxu0
    %v1405 = vadd.f32 0.0, %v1404
    %1406 = vmatmul.f32.gmra.mxu0 %v1340
    %v1407 = vpop.f32.mrf.mxu0
    %v1408 = vadd.f32 0.0, %v1407
    %1409 = vmatmul.f32.gmra.mxu0 %v1343
    %v1410 = vpop.f32.mrf.mxu0
    %v1411 = vadd.f32 0.0, %v1410
    %1412 = vmatmul.f32.gmra.mxu0 %v1346
    %v1413 = vpop.f32.mrf.mxu0
    %v1414 = vadd.f32 0.0, %v1413
    %1415 = vmatmul.f32.gmra.mxu0 %v1349
    %v1416 = vpop.f32.mrf.mxu0
    %v1417 = vadd.f32 0.0, %v1416
    %1418 = vmatmul.f32.gmra.mxu0 %v1352
    %v1419 = vpop.f32.mrf.mxu0
    %v1420 = vadd.f32 0.0, %v1419
    %1421 = vmatmul.f32.gmra.mxu0 %v1355
    %v1422 = vpop.f32.mrf.mxu0
    %v1423 = vadd.f32 0.0, %v1422
    %1424 = vmatmul.f32.gmra.mxu0 %v1358
    %v1425 = vpop.f32.mrf.mxu0
    %v1426 = vadd.f32 0.0, %v1425
    %1427 = vmatmul.f32.gmra.mxu0 %v1361
    %v1428 = vpop.f32.mrf.mxu0
    %v1429 = vadd.f32 0.0, %v1428
    %1430 = vdwg.mxu0
    %v1431 = vld [vmem:[#allocation3] sm:$0xff]
    %v1432 = vld [vmem:[#allocation3 + $0x8] sm:$0xff]
    %v1433 = vld [vmem:[#allocation3 + $0x10] sm:$0xff]
    %v1434 = vld [vmem:[#allocation3 + $0x18] sm:$0xff]
    %v1435 = vld [vmem:[#allocation3 + $0x20] sm:$0xff]
    %v1436 = vld [vmem:[#allocation3 + $0x28] sm:$0xff]
    %v1437 = vld [vmem:[#allocation3 + $0x30] sm:$0xff]
    %v1438 = vld [vmem:[#allocation3 + $0x38] sm:$0xff]
    %v1439 = vld [vmem:[#allocation3 + $0x40] sm:$0xff]
    %v1440 = vld [vmem:[#allocation3 + $0x48] sm:$0xff]
    %v1441 = vld [vmem:[#allocation3 + $0x50] sm:$0xff]
    %v1442 = vld [vmem:[#allocation3 + $0x58] sm:$0xff]
    %v1443 = vld [vmem:[#allocation3 + $0x60] sm:$0xff]
    %v1444 = vld [vmem:[#allocation3 + $0x68] sm:$0xff]
    %v1445 = vld [vmem:[#allocation3 + $0x70] sm:$0xff]
    %v1446 = vld [vmem:[#allocation3 + $0x78] sm:$0xff]
    %v1447 = vadd.f32 %v1431, %v1384
    %v1448 = vadd.f32 %v1432, %v1387
    %v1449 = vadd.f32 %v1433, %v1390
    %v1450 = vadd.f32 %v1434, %v1393
    %v1451 = vadd.f32 %v1435, %v1396
    %v1452 = vadd.f32 %v1436, %v1399
    %v1453 = vadd.f32 %v1437, %v1402
    %v1454 = vadd.f32 %v1438, %v1405
    %v1455 = vadd.f32 %v1439, %v1408
    %v1456 = vadd.f32 %v1440, %v1411
    %v1457 = vadd.f32 %v1441, %v1414
    %v1458 = vadd.f32 %v1442, %v1417
    %v1459 = vadd.f32 %v1443, %v1420
    %v1460 = vadd.f32 %v1444, %v1423
    %v1461 = vadd.f32 %v1445, %v1426
    %v1462 = vadd.f32 %v1446, %v1429
    %1463 = vst.msk [vmem:[#allocation3] sm:$0xff] %vm369, %v1447
    %1464 = vst.msk [vmem:[#allocation3 + $0x8] sm:$0xff] %vm369, %v1448
    %1465 = vst.msk [vmem:[#allocation3 + $0x10] sm:$0xff] %vm369, %v1449
    %1466 = vst.msk [vmem:[#allocation3 + $0x18] sm:$0xff] %vm369, %v1450
    %1467 = vst.msk [vmem:[#allocation3 + $0x20] sm:$0xff] %vm369, %v1451
    %1468 = vst.msk [vmem:[#allocation3 + $0x28] sm:$0xff] %vm369, %v1452
    %1469 = vst.msk [vmem:[#allocation3 + $0x30] sm:$0xff] %vm369, %v1453
    %1470 = vst.msk [vmem:[#allocation3 + $0x38] sm:$0xff] %vm369, %v1454
    %1471 = vst.msk [vmem:[#allocation3 + $0x40] sm:$0xff] %vm369, %v1455
    %1472 = vst.msk [vmem:[#allocation3 + $0x48] sm:$0xff] %vm369, %v1456
    %1473 = vst.msk [vmem:[#allocation3 + $0x50] sm:$0xff] %vm369, %v1457
    %1474 = vst.msk [vmem:[#allocation3 + $0x58] sm:$0xff] %vm369, %v1458
    %1475 = vst.msk [vmem:[#allocation3 + $0x60] sm:$0xff] %vm369, %v1459
    %1476 = vst.msk [vmem:[#allocation3 + $0x68] sm:$0xff] %vm369, %v1460
    %1477 = vst.msk [vmem:[#allocation3 + $0x70] sm:$0xff] %vm369, %v1461
    %1478 = vst.msk [vmem:[#allocation3 + $0x78] sm:$0xff] %vm369, %v1462
    %v1479 = vld [vmem:[%s1296 + $0x1] sm:$0xff]
    %v1480 = vld [vmem:[%s1296 + $0x11] sm:$0xff]
    %v1481 = vld [vmem:[%s1296 + $0x21] sm:$0xff]
    %v1482 = vld [vmem:[%s1296 + $0x31] sm:$0xff]
    %v1483 = vld [vmem:[%s1296 + $0x41] sm:$0xff]
    %v1484 = vld [vmem:[%s1296 + $0x51] sm:$0xff]
    %v1485 = vld [vmem:[%s1296 + $0x61] sm:$0xff]
    %v1486 = vld [vmem:[%s1296 + $0x71] sm:$0xff]
    %v1487 = vld [vmem:[%s1296 + $0xa1] sm:$0xff]
    %v1488 = vld [vmem:[%s1296 + $0xb1] sm:$0xff]
    %v1489 = vld [vmem:[%s1296 + $0xc1] sm:$0xff]
    %v1490 = vld [vmem:[%s1296 + $0xd1] sm:$0xff]
    %v1491 = vld [vmem:[%s1296 + $0xe1] sm:$0xff]
    %v1492 = vld [vmem:[%s1296 + $0xf1] sm:$0xff]
    %v1493 = vld [vmem:[%s1296 + $0x101] sm:$0xff]
    %v1494 = vld [vmem:[%s1296 + $0x111] sm:$0xff]
    %s1495 = scalar_lea.vmem %s1, 28
    %v1496 = vld [vmem:[%s1495] sm:$0xf]
    %v1498 = vsel %vm174, %v1479, 0
    %v1501 = vsel %vm174, %v1480, 0
    %v1504 = vsel %vm174, %v1481, 0
    %v1507 = vsel %vm174, %v1482, 0
    %v1510 = vsel %vm174, %v1483, 0
    %v1513 = vsel %vm174, %v1484, 0
    %v1516 = vsel %vm174, %v1485, 0
    %v1519 = vsel %vm174, %v1486, 0
    %v1522 = vsel %vm174, %v1487, 0
    %v1525 = vsel %vm174, %v1488, 0
    %v1528 = vsel %vm174, %v1489, 0
    %v1531 = vsel %vm174, %v1490, 0
    %v1534 = vsel %vm174, %v1491, 0
    %v1537 = vsel %vm174, %v1492, 0
    %v1540 = vsel %vm174, %v1493, 0
    %v1543 = vsel %vm174, %v1494, 0
    %v1546 = vsel %vm300, %v1496, 0
    %1548 = vmatpush.msra.mxu0 0.0
    %1549 = vmatpush.msra.mxu0 0.0
    %1550 = vmatpush.msra.mxu0 0.0
    %1551 = vmatpush.msra.mxu0 0.0
    %1552 = vmatpush.msra.mxu0 0.0
    %1553 = vmatpush.msra.mxu0 0.0
    %1554 = vmatpush.msra.mxu0 0.0
    %1555 = vmatpush.msra.mxu0 0.0
    %1556 = vmatpush.msra.mxu0 0.0
    %1557 = vmatpush.msra.mxu0 0.0
    %1558 = vmatpush.msra.mxu0 0.0
    %1559 = vmatpush.msra.mxu0 0.0
    %1560 = vmatpush.msra.mxu0 0.0
    %1561 = vmatpush.msra.mxu0 0.0
    %1562 = vmatpush.msra.mxu0 0.0
    %1563 = vmatpush.msra.mxu0 %v1546
    %1564 = vmatmul.f32.gmra.mxu0 %v1498
    %v1565 = vpop.f32.mrf.mxu0
    %v1566 = vadd.f32 0.0, %v1565
    %1567 = vmatmul.f32.gmra.mxu0 %v1501
    %v1568 = vpop.f32.mrf.mxu0
    %v1569 = vadd.f32 0.0, %v1568
    %1570 = vmatmul.f32.gmra.mxu0 %v1504
    %v1571 = vpop.f32.mrf.mxu0
    %v1572 = vadd.f32 0.0, %v1571
    %1573 = vmatmul.f32.gmra.mxu0 %v1507
    %v1574 = vpop.f32.mrf.mxu0
    %v1575 = vadd.f32 0.0, %v1574
    %1576 = vmatmul.f32.gmra.mxu0 %v1510
    %v1577 = vpop.f32.mrf.mxu0
    %v1578 = vadd.f32 0.0, %v1577
    %1579 = vmatmul.f32.gmra.mxu0 %v1513
    %v1580 = vpop.f32.mrf.mxu0
    %v1581 = vadd.f32 0.0, %v1580
    %1582 = vmatmul.f32.gmra.mxu0 %v1516
    %v1583 = vpop.f32.mrf.mxu0
    %v1584 = vadd.f32 0.0, %v1583
    %1585 = vmatmul.f32.gmra.mxu0 %v1519
    %v1586 = vpop.f32.mrf.mxu0
    %v1587 = vadd.f32 0.0, %v1586
    %1588 = vmatmul.f32.gmra.mxu0 %v1522
    %v1589 = vpop.f32.mrf.mxu0
    %v1590 = vadd.f32 0.0, %v1589
    %1591 = vmatmul.f32.gmra.mxu0 %v1525
    %v1592 = vpop.f32.mrf.mxu0
    %v1593 = vadd.f32 0.0, %v1592
    %1594 = vmatmul.f32.gmra.mxu0 %v1528
    %v1595 = vpop.f32.mrf.mxu0
    %v1596 = vadd.f32 0.0, %v1595
    %1597 = vmatmul.f32.gmra.mxu0 %v1531
    %v1598 = vpop.f32.mrf.mxu0
    %v1599 = vadd.f32 0.0, %v1598
    %1600 = vmatmul.f32.gmra.mxu0 %v1534
    %v1601 = vpop.f32.mrf.mxu0
    %v1602 = vadd.f32 0.0, %v1601
    %1603 = vmatmul.f32.gmra.mxu0 %v1537
    %v1604 = vpop.f32.mrf.mxu0
    %v1605 = vadd.f32 0.0, %v1604
    %1606 = vmatmul.f32.gmra.mxu0 %v1540
    %v1607 = vpop.f32.mrf.mxu0
    %v1608 = vadd.f32 0.0, %v1607
    %1609 = vmatmul.f32.gmra.mxu0 %v1543
    %v1610 = vpop.f32.mrf.mxu0
    %v1611 = vadd.f32 0.0, %v1610
    %1612 = vdwg.mxu0
    %v1613 = vld [vmem:[#allocation3] sm:$0xff]
    %v1614 = vld [vmem:[#allocation3 + $0x8] sm:$0xff]
    %v1615 = vld [vmem:[#allocation3 + $0x10] sm:$0xff]
    %v1616 = vld [vmem:[#allocation3 + $0x18] sm:$0xff]
    %v1617 = vld [vmem:[#allocation3 + $0x20] sm:$0xff]
    %v1618 = vld [vmem:[#allocation3 + $0x28] sm:$0xff]
    %v1619 = vld [vmem:[#allocation3 + $0x30] sm:$0xff]
    %v1620 = vld [vmem:[#allocation3 + $0x38] sm:$0xff]
    %v1621 = vld [vmem:[#allocation3 + $0x40] sm:$0xff]
    %v1622 = vld [vmem:[#allocation3 + $0x48] sm:$0xff]
    %v1623 = vld [vmem:[#allocation3 + $0x50] sm:$0xff]
    %v1624 = vld [vmem:[#allocation3 + $0x58] sm:$0xff]
    %v1625 = vld [vmem:[#allocation3 + $0x60] sm:$0xff]
    %v1626 = vld [vmem:[#allocation3 + $0x68] sm:$0xff]
    %v1627 = vld [vmem:[#allocation3 + $0x70] sm:$0xff]
    %v1628 = vld [vmem:[#allocation3 + $0x78] sm:$0xff]
    %v1629 = vadd.f32 %v1613, %v1566
    %v1630 = vadd.f32 %v1614, %v1569
    %v1631 = vadd.f32 %v1615, %v1572
    %v1632 = vadd.f32 %v1616, %v1575
    %v1633 = vadd.f32 %v1617, %v1578
    %v1634 = vadd.f32 %v1618, %v1581
    %v1635 = vadd.f32 %v1619, %v1584
    %v1636 = vadd.f32 %v1620, %v1587
    %v1637 = vadd.f32 %v1621, %v1590
    %v1638 = vadd.f32 %v1622, %v1593
    %v1639 = vadd.f32 %v1623, %v1596
    %v1640 = vadd.f32 %v1624, %v1599
    %v1641 = vadd.f32 %v1625, %v1602
    %v1642 = vadd.f32 %v1626, %v1605
    %v1643 = vadd.f32 %v1627, %v1608
    %v1644 = vadd.f32 %v1628, %v1611
    %1645 = vst.msk [vmem:[#allocation3] sm:$0xff] %vm369, %v1629
    %1646 = vst.msk [vmem:[#allocation3 + $0x8] sm:$0xff] %vm369, %v1630
    %1647 = vst.msk [vmem:[#allocation3 + $0x10] sm:$0xff] %vm369, %v1631
    %1648 = vst.msk [vmem:[#allocation3 + $0x18] sm:$0xff] %vm369, %v1632
    %1649 = vst.msk [vmem:[#allocation3 + $0x20] sm:$0xff] %vm369, %v1633
    %1650 = vst.msk [vmem:[#allocation3 + $0x28] sm:$0xff] %vm369, %v1634
    %1651 = vst.msk [vmem:[#allocation3 + $0x30] sm:$0xff] %vm369, %v1635
    %1652 = vst.msk [vmem:[#allocation3 + $0x38] sm:$0xff] %vm369, %v1636
    %1653 = vst.msk [vmem:[#allocation3 + $0x40] sm:$0xff] %vm369, %v1637
    %1654 = vst.msk [vmem:[#allocation3 + $0x48] sm:$0xff] %vm369, %v1638
    %1655 = vst.msk [vmem:[#allocation3 + $0x50] sm:$0xff] %vm369, %v1639
    %1656 = vst.msk [vmem:[#allocation3 + $0x58] sm:$0xff] %vm369, %v1640
    %1657 = vst.msk [vmem:[#allocation3 + $0x60] sm:$0xff] %vm369, %v1641
    %1658 = vst.msk [vmem:[#allocation3 + $0x68] sm:$0xff] %vm369, %v1642
    %1659 = vst.msk [vmem:[#allocation3 + $0x70] sm:$0xff] %vm369, %v1643
    %1660 = vst.msk [vmem:[#allocation3 + $0x78] sm:$0xff] %vm369, %v1644
    %v1661 = vld [vmem:[%s1296 + $0x2] sm:$0xff]
    %v1662 = vld [vmem:[%s1296 + $0x12] sm:$0xff]
    %v1663 = vld [vmem:[%s1296 + $0x22] sm:$0xff]
    %v1664 = vld [vmem:[%s1296 + $0x32] sm:$0xff]
    %v1665 = vld [vmem:[%s1296 + $0x42] sm:$0xff]
    %v1666 = vld [vmem:[%s1296 + $0x52] sm:$0xff]
    %v1667 = vld [vmem:[%s1296 + $0x62] sm:$0xff]
    %v1668 = vld [vmem:[%s1296 + $0x72] sm:$0xff]
    %v1669 = vld [vmem:[%s1296 + $0xa2] sm:$0xff]
    %v1670 = vld [vmem:[%s1296 + $0xb2] sm:$0xff]
    %v1671 = vld [vmem:[%s1296 + $0xc2] sm:$0xff]
    %v1672 = vld [vmem:[%s1296 + $0xd2] sm:$0xff]
    %v1673 = vld [vmem:[%s1296 + $0xe2] sm:$0xff]
    %v1674 = vld [vmem:[%s1296 + $0xf2] sm:$0xff]
    %v1675 = vld [vmem:[%s1296 + $0x102] sm:$0xff]
    %v1676 = vld [vmem:[%s1296 + $0x112] sm:$0xff]
    %s1677 = scalar_lea.vmem %s1, 32
    %v1678 = vld [vmem:[%s1677] sm:$0xf]
    %v1680 = vsel %vm174, %v1661, 0
    %v1683 = vsel %vm174, %v1662, 0
    %v1686 = vsel %vm174, %v1663, 0
    %v1689 = vsel %vm174, %v1664, 0
    %v1692 = vsel %vm174, %v1665, 0
    %v1695 = vsel %vm174, %v1666, 0
    %v1698 = vsel %vm174, %v1667, 0
    %v1701 = vsel %vm174, %v1668, 0
    %v1704 = vsel %vm174, %v1669, 0
    %v1707 = vsel %vm174, %v1670, 0
    %v1710 = vsel %vm174, %v1671, 0
    %v1713 = vsel %vm174, %v1672, 0
    %v1716 = vsel %vm174, %v1673, 0
    %v1719 = vsel %vm174, %v1674, 0
    %v1722 = vsel %vm174, %v1675, 0
    %v1725 = vsel %vm174, %v1676, 0
    %v1728 = vsel %vm300, %v1678, 0
    %1730 = vmatpush.msra.mxu0 0.0
    %1731 = vmatpush.msra.mxu0 0.0
    %1732 = vmatpush.msra.mxu0 0.0
    %1733 = vmatpush.msra.mxu0 0.0
    %1734 = vmatpush.msra.mxu0 0.0
    %1735 = vmatpush.msra.mxu0 0.0
    %1736 = vmatpush.msra.mxu0 0.0
    %1737 = vmatpush.msra.mxu0 0.0
    %1738 = vmatpush.msra.mxu0 0.0
    %1739 = vmatpush.msra.mxu0 0.0
    %1740 = vmatpush.msra.mxu0 0.0
    %1741 = vmatpush.msra.mxu0 0.0
    %1742 = vmatpush.msra.mxu0 0.0
    %1743 = vmatpush.msra.mxu0 0.0
    %1744 = vmatpush.msra.mxu0 0.0
    %1745 = vmatpush.msra.mxu0 %v1728
    %1746 = vmatmul.f32.gmra.mxu0 %v1680
    %v1747 = vpop.f32.mrf.mxu0
    %v1748 = vadd.f32 0.0, %v1747
    %1749 = vmatmul.f32.gmra.mxu0 %v1683
    %v1750 = vpop.f32.mrf.mxu0
    %v1751 = vadd.f32 0.0, %v1750
    %1752 = vmatmul.f32.gmra.mxu0 %v1686
    %v1753 = vpop.f32.mrf.mxu0
    %v1754 = vadd.f32 0.0, %v1753
    %1755 = vmatmul.f32.gmra.mxu0 %v1689
    %v1756 = vpop.f32.mrf.mxu0
    %v1757 = vadd.f32 0.0, %v1756
    %1758 = vmatmul.f32.gmra.mxu0 %v1692
    %v1759 = vpop.f32.mrf.mxu0
    %v1760 = vadd.f32 0.0, %v1759
    %1761 = vmatmul.f32.gmra.mxu0 %v1695
    %v1762 = vpop.f32.mrf.mxu0
    %v1763 = vadd.f32 0.0, %v1762
    %1764 = vmatmul.f32.gmra.mxu0 %v1698
    %v1765 = vpop.f32.mrf.mxu0
    %v1766 = vadd.f32 0.0, %v1765
    %1767 = vmatmul.f32.gmra.mxu0 %v1701
    %v1768 = vpop.f32.mrf.mxu0
    %v1769 = vadd.f32 0.0, %v1768
    %1770 = vmatmul.f32.gmra.mxu0 %v1704
    %v1771 = vpop.f32.mrf.mxu0
    %v1772 = vadd.f32 0.0, %v1771
    %1773 = vmatmul.f32.gmra.mxu0 %v1707
    %v1774 = vpop.f32.mrf.mxu0
    %v1775 = vadd.f32 0.0, %v1774
    %1776 = vmatmul.f32.gmra.mxu0 %v1710
    %v1777 = vpop.f32.mrf.mxu0
    %v1778 = vadd.f32 0.0, %v1777
    %1779 = vmatmul.f32.gmra.mxu0 %v1713
    %v1780 = vpop.f32.mrf.mxu0
    %v1781 = vadd.f32 0.0, %v1780
    %1782 = vmatmul.f32.gmra.mxu0 %v1716
    %v1783 = vpop.f32.mrf.mxu0
    %v1784 = vadd.f32 0.0, %v1783
    %1785 = vmatmul.f32.gmra.mxu0 %v1719
    %v1786 = vpop.f32.mrf.mxu0
    %v1787 = vadd.f32 0.0, %v1786
    %1788 = vmatmul.f32.gmra.mxu0 %v1722
    %v1789 = vpop.f32.mrf.mxu0
    %v1790 = vadd.f32 0.0, %v1789
    %1791 = vmatmul.f32.gmra.mxu0 %v1725
    %v1792 = vpop.f32.mrf.mxu0
    %v1793 = vadd.f32 0.0, %v1792
    %1794 = vdwg.mxu0
    %v1795 = vld [vmem:[#allocation3] sm:$0xff]
    %v1796 = vld [vmem:[#allocation3 + $0x8] sm:$0xff]
    %v1797 = vld [vmem:[#allocation3 + $0x10] sm:$0xff]
    %v1798 = vld [vmem:[#allocation3 + $0x18] sm:$0xff]
    %v1799 = vld [vmem:[#allocation3 + $0x20] sm:$0xff]
    %v1800 = vld [vmem:[#allocation3 + $0x28] sm:$0xff]
    %v1801 = vld [vmem:[#allocation3 + $0x30] sm:$0xff]
    %v1802 = vld [vmem:[#allocation3 + $0x38] sm:$0xff]
    %v1803 = vld [vmem:[#allocation3 + $0x40] sm:$0xff]
    %v1804 = vld [vmem:[#allocation3 + $0x48] sm:$0xff]
    %v1805 = vld [vmem:[#allocation3 + $0x50] sm:$0xff]
    %v1806 = vld [vmem:[#allocation3 + $0x58] sm:$0xff]
    %v1807 = vld [vmem:[#allocation3 + $0x60] sm:$0xff]
    %v1808 = vld [vmem:[#allocation3 + $0x68] sm:$0xff]
    %v1809 = vld [vmem:[#allocation3 + $0x70] sm:$0xff]
    %v1810 = vld [vmem:[#allocation3 + $0x78] sm:$0xff]
    %v1811 = vadd.f32 %v1795, %v1748
    %v1812 = vadd.f32 %v1796, %v1751
    %v1813 = vadd.f32 %v1797, %v1754
    %v1814 = vadd.f32 %v1798, %v1757
    %v1815 = vadd.f32 %v1799, %v1760
    %v1816 = vadd.f32 %v1800, %v1763
    %v1817 = vadd.f32 %v1801, %v1766
    %v1818 = vadd.f32 %v1802, %v1769
    %v1819 = vadd.f32 %v1803, %v1772
    %v1820 = vadd.f32 %v1804, %v1775
    %v1821 = vadd.f32 %v1805, %v1778
    %v1822 = vadd.f32 %v1806, %v1781
    %v1823 = vadd.f32 %v1807, %v1784
    %v1824 = vadd.f32 %v1808, %v1787
    %v1825 = vadd.f32 %v1809, %v1790
    %v1826 = vadd.f32 %v1810, %v1793
    %1827 = vst.msk [vmem:[#allocation3] sm:$0xff] %vm369, %v1811
    %1828 = vst.msk [vmem:[#allocation3 + $0x8] sm:$0xff] %vm369, %v1812
    %1829 = vst.msk [vmem:[#allocation3 + $0x10] sm:$0xff] %vm369, %v1813
    %1830 = vst.msk [vmem:[#allocation3 + $0x18] sm:$0xff] %vm369, %v1814
    %1831 = vst.msk [vmem:[#allocation3 + $0x20] sm:$0xff] %vm369, %v1815
    %1832 = vst.msk [vmem:[#allocation3 + $0x28] sm:$0xff] %vm369, %v1816
    %1833 = vst.msk [vmem:[#allocation3 + $0x30] sm:$0xff] %vm369, %v1817
    %1834 = vst.msk [vmem:[#allocation3 + $0x38] sm:$0xff] %vm369, %v1818
    %1835 = vst.msk [vmem:[#allocation3 + $0x40] sm:$0xff] %vm369, %v1819
    %1836 = vst.msk [vmem:[#allocation3 + $0x48] sm:$0xff] %vm369, %v1820
    %1837 = vst.msk [vmem:[#allocation3 + $0x50] sm:$0xff] %vm369, %v1821
    %1838 = vst.msk [vmem:[#allocation3 + $0x58] sm:$0xff] %vm369, %v1822
    %1839 = vst.msk [vmem:[#allocation3 + $0x60] sm:$0xff] %vm369, %v1823
    %1840 = vst.msk [vmem:[#allocation3 + $0x68] sm:$0xff] %vm369, %v1824
    %1841 = vst.msk [vmem:[#allocation3 + $0x70] sm:$0xff] %vm369, %v1825
    %1842 = vst.msk [vmem:[#allocation3 + $0x78] sm:$0xff] %vm369, %v1826
    %v1843 = vld [vmem:[#allocation3] sm:$0xff]
    %v1844 = vld [vmem:[#allocation3 + $0x8] sm:$0xff]
    %v1845 = vld [vmem:[#allocation3 + $0x10] sm:$0xff]
    %v1846 = vld [vmem:[#allocation3 + $0x18] sm:$0xff]
    %v1847 = vld [vmem:[#allocation3 + $0x20] sm:$0xff]
    %v1848 = vld [vmem:[#allocation3 + $0x28] sm:$0xff]
    %v1849 = vld [vmem:[#allocation3 + $0x30] sm:$0xff]
    %v1850 = vld [vmem:[#allocation3 + $0x38] sm:$0xff]
    %v1851 = vld [vmem:[#allocation3 + $0x40] sm:$0xff]
    %v1852 = vld [vmem:[#allocation3 + $0x48] sm:$0xff]
    %v1853 = vld [vmem:[#allocation3 + $0x50] sm:$0xff]
    %v1854 = vld [vmem:[#allocation3 + $0x58] sm:$0xff]
    %v1855 = vld [vmem:[#allocation3 + $0x60] sm:$0xff]
    %v1856 = vld [vmem:[#allocation3 + $0x68] sm:$0xff]
    %v1857 = vld [vmem:[#allocation3 + $0x70] sm:$0xff]
    %v1858 = vld [vmem:[#allocation3 + $0x78] sm:$0xff]
    %v1859 = vld [vmem:[%s2] sm:$0x1]
    %v1861 = vperm.slane %v1859, 0
    %v1863 = vadd.f32 %v1843, %v1861
    %v1864 = vadd.f32 %v1844, %v1861
    %v1865 = vadd.f32 %v1845, %v1861
    %v1866 = vadd.f32 %v1846, %v1861
    %v1867 = vadd.f32 %v1847, %v1861
    %v1868 = vadd.f32 %v1848, %v1861
    %v1869 = vadd.f32 %v1849, %v1861
    %v1870 = vadd.f32 %v1850, %v1861
    %v1871 = vadd.f32 %v1851, %v1861
    %v1872 = vadd.f32 %v1852, %v1861
    %v1873 = vadd.f32 %v1853, %v1861
    %v1874 = vadd.f32 %v1854, %v1861
    %v1875 = vadd.f32 %v1855, %v1861
    %v1876 = vadd.f32 %v1856, %v1861
    %v1877 = vadd.f32 %v1857, %v1861
    %v1878 = vadd.f32 %v1858, %v1861
    %1879 = vst.msk [vmem:[%s3] sm:$0xff] %vm369, %v1863
    %1880 = vst.msk [vmem:[%s3 + $0x8] sm:$0xff] %vm369, %v1864
    %1881 = vst.msk [vmem:[%s3 + $0x10] sm:$0xff] %vm369, %v1865
    %1882 = vst.msk [vmem:[%s3 + $0x18] sm:$0xff] %vm369, %v1866
    %1883 = vst.msk [vmem:[%s3 + $0x20] sm:$0xff] %vm369, %v1867
    %1884 = vst.msk [vmem:[%s3 + $0x28] sm:$0xff] %vm369, %v1868
    %1885 = vst.msk [vmem:[%s3 + $0x30] sm:$0xff] %vm369, %v1869
    %1886 = vst.msk [vmem:[%s3 + $0x38] sm:$0xff] %vm369, %v1870
    %1887 = vst.msk [vmem:[%s3 + $0x40] sm:$0xff] %vm369, %v1871
    %1888 = vst.msk [vmem:[%s3 + $0x48] sm:$0xff] %vm369, %v1872
    %1889 = vst.msk [vmem:[%s3 + $0x50] sm:$0xff] %vm369, %v1873
    %1890 = vst.msk [vmem:[%s3 + $0x58] sm:$0xff] %vm369, %v1874
    %1891 = vst.msk [vmem:[%s3 + $0x60] sm:$0xff] %vm369, %v1875
    %1892 = vst.msk [vmem:[%s3 + $0x68] sm:$0xff] %vm369, %v1876
    %1893 = vst.msk [vmem:[%s3 + $0x70] sm:$0xff] %vm369, %v1877
    %1894 = vst.msk [vmem:[%s3 + $0x78] sm:$0xff] %vm369, %v1878
    // Predicated region
    $region18: #{tpu_custom_call.1} parent=1 // pred_check
      _
    $region19: #{tpu_custom_call.1} parent=1 // pred_check_branch
      %1896 = sbr.rel (0) target = $region21
    $region20: #{tpu_custom_call.1} parent=1 // pred_region
      _
    $region21: #{tpu_custom_call.1} parent=1 // pred_fallthru
      _
    // Predicated region
    $region22: #{tpu_custom_call.1} parent=1 // pred_check
      _
    $region23: #{tpu_custom_call.1} parent=1 // pred_check_branch
      %1898 = sbr.rel (0) target = $region25
    $region24: #{tpu_custom_call.1} parent=1 // pred_region
      _
    $region25: #{tpu_custom_call.1} parent=1 // pred_fallthru
      _
    %1899 = vsyncpa [#allocation5], 1

</llo_original>
